<compile_context>
chip_gen: v6e
topology: v6e:2x2x1
jax: 0.10.0
libtpu: 0.0.40
codegen_flags: <defaults>
</compile_context>

<pallas_src>
import numpy as np
import jax
import jax.numpy as jnp
from jax.experimental import pallas as pl
from jax.experimental.pallas import tpu as pltpu


# ---------------------------------------------------------------------------
# Fused Pallas kernel: conv1(+ReLU) -> view-chain -> LSTM -> Linear
# ---------------------------------------------------------------------------
def _resnls_fused_kernel(x_ref, wconv_ref, bconv_ref, wih_ref, bgate_ref,
                         whh_ref, wlin_ref, blin_ref, out_ref):
    # x:      (Bp, Kp)       f32  zero-padded flattened NCHW input
    # wconv:  (Kp, T*F)      bf16 conv1 as a Toeplitz matrix; cols in PyTorch NCHW-flatten
    #                             order (== t-major/f-minor w.r.t. the .view() regrouping)
    # bconv:  (1, T*F)       f32  conv bias repeated per height position
    # wih:    (F, 4H)        bf16 W_ih^T
    # bgate:  (1, 4H)        f32  b_ih + b_hh
    # whh:    (H, 4H)        bf16 W_hh^T
    # wlin:   (H, O) f32;  blin: (1, O) f32;  out: (Bp, O) f32
    H = whh_ref.shape[0]
    F = wih_ref.shape[0]
    T = wconv_ref.shape[1] // F
    B = x_ref.shape[0]

    # conv1 + bias + ReLU (dropout = identity at inference); bf16 operands, f32 accumulate.
    xb = x_ref[...].astype(jnp.bfloat16)
    conv = jnp.maximum(
        jnp.dot(xb, wconv_ref[...], preferred_element_type=jnp.float32)
        + bconv_ref[...], 0.0)                                     # (B, T*F) f32
    conv_bf = conv.astype(jnp.bfloat16)

    # LSTM input projection for all timesteps, hoisted off the recurrent critical path.
    # conv columns are already grouped exactly as PyTorch's .view(B,-1).view(B,T,-1)
    # produces them, so feat_t is just a static lane slice; one small (B,F)@(F,4H) bf16
    # matmul per t, all independent of h (the unrolled scheduler overlaps them freely).
    wih = wih_ref[...]
    bgate = bgate_ref[...]
    gx = [jnp.dot(conv_bf[:, t * F:(t + 1) * F], wih,
                  preferred_element_type=jnp.float32) + bgate
          for t in range(T)]                                       # T x (B, 4H) f32

    # Hoist invariant recurrent weight load out of the unrolled recurrence.
    whh = whh_ref[...]

    h = jnp.zeros((B, H), jnp.float32)
    c = jnp.zeros((B, H), jnp.float32)
    for t in range(T):  # T is small & static -> fully unrolled; h/c stay in vregs
        # Only h @ W_hh^T (single bf16 MXU pass) sits on the serial dependency chain.
        gates = gx[t] + jnp.dot(h.astype(jnp.bfloat16), whh,
                                preferred_element_type=jnp.float32)   # (B, 4H) f32
        sig = jax.nn.sigmoid(gates)          # one wide EUP op covers i, f, o gates
        i_g = sig[:, 0 * H:1 * H]
        f_g = sig[:, 1 * H:2 * H]
        o_g = sig[:, 3 * H:4 * H]
        g_g = jnp.tanh(gates[:, 2 * H:3 * H])
        c = f_g * c + i_g * g_g
        h = o_g * jnp.tanh(c)

    # Final hidden state (== LSTM output at t = -1) -> linear head (tiny, kept f32).
    out_ref[...] = (jnp.dot(h, wlin_ref[...], preferred_element_type=jnp.float32)
                    + blin_ref[...])


def _round_up(n, m):
    return ((n + m - 1) // m) * m


@jax.jit
def resnls_forward(params, x):
    """x: NCHW (B, Cin, H_in, W) with W == conv kernel width (module design)."""
    B = x.shape[0]
    x_flat = x.reshape(B, -1).astype(jnp.float32)   # free row-major NCHW flatten
    K = x_flat.shape[1]
    Kp = params["w_conv"].shape[0]                  # contraction dim, host-padded to 128
    Bp = _round_up(B, 8)                            # fill whole sublanes; pad rows are dead work
    x_pad = jnp.zeros((Bp, Kp), jnp.float32).at[:B, :K].set(x_flat)
    O = params["w_lin_t"].shape[1]
    out = pl.pallas_call(
        _resnls_fused_kernel,
        out_shape=jax.ShapeDtypeStruct((Bp, O), jnp.float32),
        in_specs=[pl.BlockSpec(memory_space=pltpu.MemorySpace.VMEM)] * 8,
        out_specs=pl.BlockSpec(memory_space=pltpu.MemorySpace.VMEM),
    )(x_pad, params["w_conv"], params["b_conv"], params["w_ih_t"],
      params["b_gates"], params["w_hh_t"], params["w_lin_t"], params["b_lin"])
    return out[:B]


# ---------------------------------------------------------------------------
# Parameter construction (host side, done once)
# ---------------------------------------------------------------------------
def init_raw_params(key, input_channels, height, hidden_size, output_size):
    """Parameters in PyTorch layout (Conv2d / LSTM / Linear conventions)."""
    ks = jax.random.split(key, 8)
    f_lstm = hidden_size  # TODO(synk): reference declares input_size=hidden*3; see header note.
    return {
        "cnn1_w": 0.2 * jax.random.normal(
            ks[0], (hidden_size, input_channels, 4, height), jnp.float32),
        "cnn1_b": 0.2 * jax.random.normal(ks[1], (hidden_size,), jnp.float32),
        "w_ih": 0.3 * jax.random.normal(ks[2], (4 * hidden_size, f_lstm), jnp.float32),
        "w_hh": 0.3 * jax.random.normal(ks[3], (4 * hidden_size, hidden_size), jnp.float32),
        "b_ih": 0.3 * jax.random.normal(ks[4], (4 * hidden_size,), jnp.float32),
        "b_hh": 0.3 * jax.random.normal(ks[5], (4 * hidden_size,), jnp.float32),
        "w_lin": 0.5 * jax.random.normal(ks[6], (output_size, hidden_size), jnp.float32),
        "b_lin": 0.5 * jax.random.normal(ks[7], (output_size,), jnp.float32),
    }


def prepare_kernel_params(raw, h_in):
    """Fold conv1 into a host-built Toeplitz matmul weight and lay out the LSTM/linear
    weights for the kernel.  Matmul weights are bf16 (f32 MXU accumulation in-kernel);
    biases and the tiny linear head stay f32."""
    w1 = np.asarray(raw["cnn1_w"], np.float32)        # (Cout, Cin, KH, KW)
    b1 = np.asarray(raw["cnn1_b"], np.float32)
    Cout, Cin, KH, KW = w1.shape
    Hout = h_in + 2 - KH + 1                          # padding=(1,0), stride 1
    # Conv out-width is 1 (kernel width spans input width) -> seq_len T = Hout, F = Cout.

    # conv1 as a dense (Cin*H_in*KW, Cout*Hout) matrix acting on the flattened NCHW input;
    # rows zero-padded to a multiple of 128 so the first MXU contraction is tile-aligned.
    wc = np.zeros((Cin, h_in, KW, Cout, Hout), np.float32)
    for ho in range(Hout):
        for kh in range(KH):
            hi = ho + kh - 1                          # top zero-padding of 1
            if 0 <= hi < h_in:
                wc[:, hi, :, :, ho] = np.transpose(w1[:, :, kh, :], (1, 2, 0))
    w_conv = wc.reshape(Cin * h_in * KW, Cout * Hout)
    k_pad = _round_up(w_conv.shape[0], 128)
    w_conv = np.pad(w_conv, ((0, k_pad - w_conv.shape[0]), (0, 0)))
    b_conv = np.repeat(b1, Hout)[None, :]             # (1, Cout*Hout), flatten order c-major

    return {
        "w_conv": jnp.asarray(w_conv, dtype=jnp.bfloat16),
        "b_conv": jnp.asarray(b_conv, dtype=jnp.float32),
        "w_ih_t": jnp.asarray(np.asarray(raw["w_ih"], np.float32).T, dtype=jnp.bfloat16),
        "b_gates": jnp.asarray(
            np.asarray(raw["b_ih"] + raw["b_hh"], np.float32)[None, :]),        # (1, 4H)
        "w_hh_t": jnp.asarray(np.asarray(raw["w_hh"], np.float32).T, dtype=jnp.bfloat16),
        "w_lin_t": jnp.asarray(np.asarray(raw["w_lin"], np.float32).T),          # (H, O) f32
        "b_lin": jnp.asarray(np.asarray(raw["b_lin"], np.float32)[None, :]),
    }


# ---------------------------------------------------------------------------
# Pure-JAX reference (mirrors the PyTorch forward op-for-op) for validation
# ---------------------------------------------------------------------------
def resnls_reference(raw, x):
    hp = jax.lax.Precision.HIGHEST
    conv = jax.lax.conv_general_dilated(
        x, raw["cnn1_w"], window_strides=(1, 1), padding=((1, 1), (0, 0)),
        dimension_numbers=("NCHW", "OIHW", "NCHW"), precision=hp)
    conv = jnp.maximum(conv + raw["cnn1_b"][None, :, None, None], 0.0)
    B, Cc, Hc, Wc = conv.shape
    seq_len = Hc * Wc
    feat = conv.reshape(B, -1).reshape(B, seq_len, -1)   # PyTorch .view() chain
    H = raw["w_hh"].shape[1]
    h = jnp.zeros((B, H), jnp.float32)
    c = jnp.zeros((B, H), jnp.float32)
    for t in range(seq_len):
        gates = (jnp.dot(feat[:, t, :], raw["w_ih"].T, precision=hp)
                 + jnp.dot(h, raw["w_hh"].T, precision=hp)
                 + raw["b_ih"] + raw["b_hh"])
        i = jax.nn.sigmoid(gates[:, :H])
        f = jax.nn.sigmoid(gates[:, H:2 * H])
        g = jnp.tanh(gates[:, 2 * H:3 * H])
        o = jax.nn.sigmoid(gates[:, 3 * H:])
        c = f * c + i * g
        h = o * jnp.tanh(c)
    return jnp.dot(h, raw["w_lin"].T, precision=hp) + raw["b_lin"][None, :]


if __name__ == "__main__":
    B = 2
    input_channels = 1
    height = 12          # conv kernel width == input width -> conv output width 1
    H_in = 9             # -> Hout = 8 -> seq_len T = 8, per-step features F = hidden
    hidden_size = 32     # multiple of 32 so 4H = 128 lanes; gate slices are 32-aligned
    output_size = 1

    key = jax.random.PRNGKey(0)
    pkey, xkey = jax.random.split(key)
    raw = init_raw_params(pkey, input_channels, height, hidden_size, output_size)
    params = prepare_kernel_params(raw, H_in)
    x = jax.random.normal(xkey, (B, input_channels, H_in, height), jnp.float32)

    out = jax.block_until_ready(resnls_forward(params, x))
    assert out.shape == (B, output_size)
    assert bool(jnp.all(jnp.isfinite(out)))

    ref = resnls_reference(raw, x)
    assert bool(jnp.allclose(out, ref, rtol=5e-2, atol=5e-2)), (out, ref)

    print("KERNEL_OK")
</pallas_src>

<mosaic_0001>
module attributes {stable_mosaic.version = 11 : i64} {
  func.func @_resnls_fused_kernel(%arg0: memref<8x128xf32, #tpu.memory_space<vmem>>, %arg1: memref<128x256xbf16, #tpu.memory_space<vmem>>, %arg2: memref<1x256xf32, #tpu.memory_space<vmem>>, %arg3: memref<32x128xbf16, #tpu.memory_space<vmem>>, %arg4: memref<1x128xf32, #tpu.memory_space<vmem>>, %arg5: memref<32x128xbf16, #tpu.memory_space<vmem>>, %arg6: memref<32x1xf32, #tpu.memory_space<vmem>>, %arg7: memref<1x1xf32, #tpu.memory_space<vmem>>, %arg8: memref<8x1xf32, #tpu.memory_space<vmem>>) attributes {dimension_semantics = [], scalar_prefetch = 0 : i64, scratch_operands = 0 : i64, tpu.core_type = #tpu.core_type<tc>} {
    %c0 = arith.constant 0 : index
    %c0_0 = arith.constant 0 : index
    %0 = vector.load %arg0[%c0, %c0_0] : memref<8x128xf32, #tpu.memory_space<vmem>>, vector<8x128xf32>
    %1 = arith.truncf %0 : vector<8x128xf32> to vector<8x128xbf16>
    %c0_1 = arith.constant 0 : index
    %c0_2 = arith.constant 0 : index
    %2 = vector.load %arg1[%c0_1, %c0_2] : memref<128x256xbf16, #tpu.memory_space<vmem>>, vector<128x256xbf16>
    %cst = arith.constant dense<0.000000e+00> : vector<8x256xf32>
    %3 = tpu.matmul %1, %2, %cst {dimension_numbers = #tpu.dot_dimension_numbers<[1], [0], [0], [1], [0, 0, 1, 1], [], []>} : vector<8x128xbf16>, vector<128x256xbf16>, vector<8x256xf32> -> vector<8x256xf32>
    %c0_3 = arith.constant 0 : index
    %c0_4 = arith.constant 0 : index
    %4 = vector.load %arg2[%c0_3, %c0_4] : memref<1x256xf32, #tpu.memory_space<vmem>>, vector<1x256xf32>
    %5 = vector.broadcast %4 : vector<1x256xf32> to vector<8x256xf32>
    %6 = arith.addf %3, %5 : vector<8x256xf32>
    %cst_5 = arith.constant 0.000000e+00 : f32
    %7 = vector.broadcast %cst_5 : f32 to vector<8x256xf32>
    %8 = arith.maximumf %6, %7 : vector<8x256xf32>
    %9 = arith.truncf %8 : vector<8x256xf32> to vector<8x256xbf16>
    %c0_6 = arith.constant 0 : index
    %c0_7 = arith.constant 0 : index
    %10 = vector.load %arg3[%c0_6, %c0_7] : memref<32x128xbf16, #tpu.memory_space<vmem>>, vector<32x128xbf16>
    %c0_8 = arith.constant 0 : index
    %c0_9 = arith.constant 0 : index
    %11 = vector.load %arg4[%c0_8, %c0_9] : memref<1x128xf32, #tpu.memory_space<vmem>>, vector<1x128xf32>
    %12 = vector.extract_strided_slice %9 {offsets = [0, 0], sizes = [8, 32], strides = [1, 1]} : vector<8x256xbf16> to vector<8x32xbf16>
    %cst_10 = arith.constant dense<0.000000e+00> : vector<8x128xf32>
    %13 = tpu.matmul %12, %10, %cst_10 {dimension_numbers = #tpu.dot_dimension_numbers<[1], [0], [0], [1], [0, 0, 1, 1], [], []>} : vector<8x32xbf16>, vector<32x128xbf16>, vector<8x128xf32> -> vector<8x128xf32>
    %14 = vector.broadcast %11 : vector<1x128xf32> to vector<8x128xf32>
    %15 = arith.addf %13, %14 : vector<8x128xf32>
    %16 = vector.extract_strided_slice %9 {offsets = [0, 32], sizes = [8, 32], strides = [1, 1]} : vector<8x256xbf16> to vector<8x32xbf16>
    %cst_11 = arith.constant dense<0.000000e+00> : vector<8x128xf32>
    %17 = tpu.matmul %16, %10, %cst_11 {dimension_numbers = #tpu.dot_dimension_numbers<[1], [0], [0], [1], [0, 0, 1, 1], [], []>} : vector<8x32xbf16>, vector<32x128xbf16>, vector<8x128xf32> -> vector<8x128xf32>
    %18 = vector.broadcast %11 : vector<1x128xf32> to vector<8x128xf32>
    %19 = arith.addf %17, %18 : vector<8x128xf32>
    %20 = vector.extract_strided_slice %9 {offsets = [0, 64], sizes = [8, 32], strides = [1, 1]} : vector<8x256xbf16> to vector<8x32xbf16>
    %cst_12 = arith.constant dense<0.000000e+00> : vector<8x128xf32>
    %21 = tpu.matmul %20, %10, %cst_12 {dimension_numbers = #tpu.dot_dimension_numbers<[1], [0], [0], [1], [0, 0, 1, 1], [], []>} : vector<8x32xbf16>, vector<32x128xbf16>, vector<8x128xf32> -> vector<8x128xf32>
    %22 = vector.broadcast %11 : vector<1x128xf32> to vector<8x128xf32>
    %23 = arith.addf %21, %22 : vector<8x128xf32>
    %24 = vector.extract_strided_slice %9 {offsets = [0, 96], sizes = [8, 32], strides = [1, 1]} : vector<8x256xbf16> to vector<8x32xbf16>
    %cst_13 = arith.constant dense<0.000000e+00> : vector<8x128xf32>
    %25 = tpu.matmul %24, %10, %cst_13 {dimension_numbers = #tpu.dot_dimension_numbers<[1], [0], [0], [1], [0, 0, 1, 1], [], []>} : vector<8x32xbf16>, vector<32x128xbf16>, vector<8x128xf32> -> vector<8x128xf32>
    %26 = vector.broadcast %11 : vector<1x128xf32> to vector<8x128xf32>
    %27 = arith.addf %25, %26 : vector<8x128xf32>
    %28 = vector.extract_strided_slice %9 {offsets = [0, 128], sizes = [8, 32], strides = [1, 1]} : vector<8x256xbf16> to vector<8x32xbf16>
    %cst_14 = arith.constant dense<0.000000e+00> : vector<8x128xf32>
    %29 = tpu.matmul %28, %10, %cst_14 {dimension_numbers = #tpu.dot_dimension_numbers<[1], [0], [0], [1], [0, 0, 1, 1], [], []>} : vector<8x32xbf16>, vector<32x128xbf16>, vector<8x128xf32> -> vector<8x128xf32>
    %30 = vector.broadcast %11 : vector<1x128xf32> to vector<8x128xf32>
    %31 = arith.addf %29, %30 : vector<8x128xf32>
    %32 = vector.extract_strided_slice %9 {offsets = [0, 160], sizes = [8, 32], strides = [1, 1]} : vector<8x256xbf16> to vector<8x32xbf16>
    %cst_15 = arith.constant dense<0.000000e+00> : vector<8x128xf32>
    %33 = tpu.matmul %32, %10, %cst_15 {dimension_numbers = #tpu.dot_dimension_numbers<[1], [0], [0], [1], [0, 0, 1, 1], [], []>} : vector<8x32xbf16>, vector<32x128xbf16>, vector<8x128xf32> -> vector<8x128xf32>
    %34 = vector.broadcast %11 : vector<1x128xf32> to vector<8x128xf32>
    %35 = arith.addf %33, %34 : vector<8x128xf32>
    %36 = vector.extract_strided_slice %9 {offsets = [0, 192], sizes = [8, 32], strides = [1, 1]} : vector<8x256xbf16> to vector<8x32xbf16>
    %cst_16 = arith.constant dense<0.000000e+00> : vector<8x128xf32>
    %37 = tpu.matmul %36, %10, %cst_16 {dimension_numbers = #tpu.dot_dimension_numbers<[1], [0], [0], [1], [0, 0, 1, 1], [], []>} : vector<8x32xbf16>, vector<32x128xbf16>, vector<8x128xf32> -> vector<8x128xf32>
    %38 = vector.broadcast %11 : vector<1x128xf32> to vector<8x128xf32>
    %39 = arith.addf %37, %38 : vector<8x128xf32>
    %40 = vector.extract_strided_slice %9 {offsets = [0, 224], sizes = [8, 32], strides = [1, 1]} : vector<8x256xbf16> to vector<8x32xbf16>
    %cst_17 = arith.constant dense<0.000000e+00> : vector<8x128xf32>
    %41 = tpu.matmul %40, %10, %cst_17 {dimension_numbers = #tpu.dot_dimension_numbers<[1], [0], [0], [1], [0, 0, 1, 1], [], []>} : vector<8x32xbf16>, vector<32x128xbf16>, vector<8x128xf32> -> vector<8x128xf32>
    %42 = vector.broadcast %11 : vector<1x128xf32> to vector<8x128xf32>
    %43 = arith.addf %41, %42 : vector<8x128xf32>
    %c0_18 = arith.constant 0 : index
    %c0_19 = arith.constant 0 : index
    %44 = vector.load %arg5[%c0_18, %c0_19] : memref<32x128xbf16, #tpu.memory_space<vmem>>, vector<32x128xbf16>
    %cst_20 = arith.constant 0.000000e+00 : f32
    %45 = vector.broadcast %cst_20 : f32 to vector<8x32xf32>
    %cst_21 = arith.constant 0.000000e+00 : f32
    %46 = vector.broadcast %cst_21 : f32 to vector<8x32xf32>
    %47 = arith.truncf %45 : vector<8x32xf32> to vector<8x32xbf16>
    %cst_22 = arith.constant dense<0.000000e+00> : vector<8x128xf32>
    %48 = tpu.matmul %47, %44, %cst_22 {dimension_numbers = #tpu.dot_dimension_numbers<[1], [0], [0], [1], [0, 0, 1, 1], [], []>} : vector<8x32xbf16>, vector<32x128xbf16>, vector<8x128xf32> -> vector<8x128xf32>
    %49 = arith.addf %15, %48 : vector<8x128xf32>
    %50 = arith.negf %49 : vector<8x128xf32>
    %51 = math.exp %50 : vector<8x128xf32>
    %cst_23 = arith.constant 1.000000e+00 : f32
    %52 = vector.broadcast %cst_23 : f32 to vector<8x128xf32>
    %53 = arith.addf %52, %51 : vector<8x128xf32>
    %54 = arith.divf %52, %53 : vector<8x128xf32>
    %55 = vector.extract_strided_slice %54 {offsets = [0, 0], sizes = [8, 32], strides = [1, 1]} : vector<8x128xf32> to vector<8x32xf32>
    %56 = vector.extract_strided_slice %54 {offsets = [0, 32], sizes = [8, 32], strides = [1, 1]} : vector<8x128xf32> to vector<8x32xf32>
    %57 = vector.extract_strided_slice %54 {offsets = [0, 96], sizes = [8, 32], strides = [1, 1]} : vector<8x128xf32> to vector<8x32xf32>
    %58 = vector.extract_strided_slice %49 {offsets = [0, 64], sizes = [8, 32], strides = [1, 1]} : vector<8x128xf32> to vector<8x32xf32>
    %59 = math.tanh %58 : vector<8x32xf32>
    %60 = arith.mulf %56, %46 : vector<8x32xf32>
    %61 = arith.mulf %55, %59 : vector<8x32xf32>
    %62 = arith.addf %60, %61 : vector<8x32xf32>
    %63 = math.tanh %62 : vector<8x32xf32>
    %64 = arith.mulf %57, %63 : vector<8x32xf32>
    %65 = arith.truncf %64 : vector<8x32xf32> to vector<8x32xbf16>
    %cst_24 = arith.constant dense<0.000000e+00> : vector<8x128xf32>
    %66 = tpu.matmul %65, %44, %cst_24 {dimension_numbers = #tpu.dot_dimension_numbers<[1], [0], [0], [1], [0, 0, 1, 1], [], []>} : vector<8x32xbf16>, vector<32x128xbf16>, vector<8x128xf32> -> vector<8x128xf32>
    %67 = arith.addf %19, %66 : vector<8x128xf32>
    %68 = arith.negf %67 : vector<8x128xf32>
    %69 = math.exp %68 : vector<8x128xf32>
    %cst_25 = arith.constant 1.000000e+00 : f32
    %70 = vector.broadcast %cst_25 : f32 to vector<8x128xf32>
    %71 = arith.addf %70, %69 : vector<8x128xf32>
    %72 = arith.divf %70, %71 : vector<8x128xf32>
    %73 = vector.extract_strided_slice %72 {offsets = [0, 0], sizes = [8, 32], strides = [1, 1]} : vector<8x128xf32> to vector<8x32xf32>
    %74 = vector.extract_strided_slice %72 {offsets = [0, 32], sizes = [8, 32], strides = [1, 1]} : vector<8x128xf32> to vector<8x32xf32>
    %75 = vector.extract_strided_slice %72 {offsets = [0, 96], sizes = [8, 32], strides = [1, 1]} : vector<8x128xf32> to vector<8x32xf32>
    %76 = vector.extract_strided_slice %67 {offsets = [0, 64], sizes = [8, 32], strides = [1, 1]} : vector<8x128xf32> to vector<8x32xf32>
    %77 = math.tanh %76 : vector<8x32xf32>
    %78 = arith.mulf %74, %62 : vector<8x32xf32>
    %79 = arith.mulf %73, %77 : vector<8x32xf32>
    %80 = arith.addf %78, %79 : vector<8x32xf32>
    %81 = math.tanh %80 : vector<8x32xf32>
    %82 = arith.mulf %75, %81 : vector<8x32xf32>
    %83 = arith.truncf %82 : vector<8x32xf32> to vector<8x32xbf16>
    %cst_26 = arith.constant dense<0.000000e+00> : vector<8x128xf32>
    %84 = tpu.matmul %83, %44, %cst_26 {dimension_numbers = #tpu.dot_dimension_numbers<[1], [0], [0], [1], [0, 0, 1, 1], [], []>} : vector<8x32xbf16>, vector<32x128xbf16>, vector<8x128xf32> -> vector<8x128xf32>
    %85 = arith.addf %23, %84 : vector<8x128xf32>
    %86 = arith.negf %85 : vector<8x128xf32>
    %87 = math.exp %86 : vector<8x128xf32>
    %cst_27 = arith.constant 1.000000e+00 : f32
    %88 = vector.broadcast %cst_27 : f32 to vector<8x128xf32>
    %89 = arith.addf %88, %87 : vector<8x128xf32>
    %90 = arith.divf %88, %89 : vector<8x128xf32>
    %91 = vector.extract_strided_slice %90 {offsets = [0, 0], sizes = [8, 32], strides = [1, 1]} : vector<8x128xf32> to vector<8x32xf32>
    %92 = vector.extract_strided_slice %90 {offsets = [0, 32], sizes = [8, 32], strides = [1, 1]} : vector<8x128xf32> to vector<8x32xf32>
    %93 = vector.extract_strided_slice %90 {offsets = [0, 96], sizes = [8, 32], strides = [1, 1]} : vector<8x128xf32> to vector<8x32xf32>
    %94 = vector.extract_strided_slice %85 {offsets = [0, 64], sizes = [8, 32], strides = [1, 1]} : vector<8x128xf32> to vector<8x32xf32>
    %95 = math.tanh %94 : vector<8x32xf32>
    %96 = arith.mulf %92, %80 : vector<8x32xf32>
    %97 = arith.mulf %91, %95 : vector<8x32xf32>
    %98 = arith.addf %96, %97 : vector<8x32xf32>
    %99 = math.tanh %98 : vector<8x32xf32>
    %100 = arith.mulf %93, %99 : vector<8x32xf32>
    %101 = arith.truncf %100 : vector<8x32xf32> to vector<8x32xbf16>
    %cst_28 = arith.constant dense<0.000000e+00> : vector<8x128xf32>
    %102 = tpu.matmul %101, %44, %cst_28 {dimension_numbers = #tpu.dot_dimension_numbers<[1], [0], [0], [1], [0, 0, 1, 1], [], []>} : vector<8x32xbf16>, vector<32x128xbf16>, vector<8x128xf32> -> vector<8x128xf32>
    %103 = arith.addf %27, %102 : vector<8x128xf32>
    %104 = arith.negf %103 : vector<8x128xf32>
    %105 = math.exp %104 : vector<8x128xf32>
    %cst_29 = arith.constant 1.000000e+00 : f32
    %106 = vector.broadcast %cst_29 : f32 to vector<8x128xf32>
    %107 = arith.addf %106, %105 : vector<8x128xf32>
    %108 = arith.divf %106, %107 : vector<8x128xf32>
    %109 = vector.extract_strided_slice %108 {offsets = [0, 0], sizes = [8, 32], strides = [1, 1]} : vector<8x128xf32> to vector<8x32xf32>
    %110 = vector.extract_strided_slice %108 {offsets = [0, 32], sizes = [8, 32], strides = [1, 1]} : vector<8x128xf32> to vector<8x32xf32>
    %111 = vector.extract_strided_slice %108 {offsets = [0, 96], sizes = [8, 32], strides = [1, 1]} : vector<8x128xf32> to vector<8x32xf32>
    %112 = vector.extract_strided_slice %103 {offsets = [0, 64], sizes = [8, 32], strides = [1, 1]} : vector<8x128xf32> to vector<8x32xf32>
    %113 = math.tanh %112 : vector<8x32xf32>
    %114 = arith.mulf %110, %98 : vector<8x32xf32>
    %115 = arith.mulf %109, %113 : vector<8x32xf32>
    %116 = arith.addf %114, %115 : vector<8x32xf32>
    %117 = math.tanh %116 : vector<8x32xf32>
    %118 = arith.mulf %111, %117 : vector<8x32xf32>
    %119 = arith.truncf %118 : vector<8x32xf32> to vector<8x32xbf16>
    %cst_30 = arith.constant dense<0.000000e+00> : vector<8x128xf32>
    %120 = tpu.matmul %119, %44, %cst_30 {dimension_numbers = #tpu.dot_dimension_numbers<[1], [0], [0], [1], [0, 0, 1, 1], [], []>} : vector<8x32xbf16>, vector<32x128xbf16>, vector<8x128xf32> -> vector<8x128xf32>
    %121 = arith.addf %31, %120 : vector<8x128xf32>
    %122 = arith.negf %121 : vector<8x128xf32>
    %123 = math.exp %122 : vector<8x128xf32>
    %cst_31 = arith.constant 1.000000e+00 : f32
    %124 = vector.broadcast %cst_31 : f32 to vector<8x128xf32>
    %125 = arith.addf %124, %123 : vector<8x128xf32>
    %126 = arith.divf %124, %125 : vector<8x128xf32>
    %127 = vector.extract_strided_slice %126 {offsets = [0, 0], sizes = [8, 32], strides = [1, 1]} : vector<8x128xf32> to vector<8x32xf32>
    %128 = vector.extract_strided_slice %126 {offsets = [0, 32], sizes = [8, 32], strides = [1, 1]} : vector<8x128xf32> to vector<8x32xf32>
    %129 = vector.extract_strided_slice %126 {offsets = [0, 96], sizes = [8, 32], strides = [1, 1]} : vector<8x128xf32> to vector<8x32xf32>
    %130 = vector.extract_strided_slice %121 {offsets = [0, 64], sizes = [8, 32], strides = [1, 1]} : vector<8x128xf32> to vector<8x32xf32>
    %131 = math.tanh %130 : vector<8x32xf32>
    %132 = arith.mulf %128, %116 : vector<8x32xf32>
    %133 = arith.mulf %127, %131 : vector<8x32xf32>
    %134 = arith.addf %132, %133 : vector<8x32xf32>
    %135 = math.tanh %134 : vector<8x32xf32>
    %136 = arith.mulf %129, %135 : vector<8x32xf32>
    %137 = arith.truncf %136 : vector<8x32xf32> to vector<8x32xbf16>
    %cst_32 = arith.constant dense<0.000000e+00> : vector<8x128xf32>
    %138 = tpu.matmul %137, %44, %cst_32 {dimension_numbers = #tpu.dot_dimension_numbers<[1], [0], [0], [1], [0, 0, 1, 1], [], []>} : vector<8x32xbf16>, vector<32x128xbf16>, vector<8x128xf32> -> vector<8x128xf32>
    %139 = arith.addf %35, %138 : vector<8x128xf32>
    %140 = arith.negf %139 : vector<8x128xf32>
    %141 = math.exp %140 : vector<8x128xf32>
    %cst_33 = arith.constant 1.000000e+00 : f32
    %142 = vector.broadcast %cst_33 : f32 to vector<8x128xf32>
    %143 = arith.addf %142, %141 : vector<8x128xf32>
    %144 = arith.divf %142, %143 : vector<8x128xf32>
    %145 = vector.extract_strided_slice %144 {offsets = [0, 0], sizes = [8, 32], strides = [1, 1]} : vector<8x128xf32> to vector<8x32xf32>
    %146 = vector.extract_strided_slice %144 {offsets = [0, 32], sizes = [8, 32], strides = [1, 1]} : vector<8x128xf32> to vector<8x32xf32>
    %147 = vector.extract_strided_slice %144 {offsets = [0, 96], sizes = [8, 32], strides = [1, 1]} : vector<8x128xf32> to vector<8x32xf32>
    %148 = vector.extract_strided_slice %139 {offsets = [0, 64], sizes = [8, 32], strides = [1, 1]} : vector<8x128xf32> to vector<8x32xf32>
    %149 = math.tanh %148 : vector<8x32xf32>
    %150 = arith.mulf %146, %134 : vector<8x32xf32>
    %151 = arith.mulf %145, %149 : vector<8x32xf32>
    %152 = arith.addf %150, %151 : vector<8x32xf32>
    %153 = math.tanh %152 : vector<8x32xf32>
    %154 = arith.mulf %147, %153 : vector<8x32xf32>
    %155 = arith.truncf %154 : vector<8x32xf32> to vector<8x32xbf16>
    %cst_34 = arith.constant dense<0.000000e+00> : vector<8x128xf32>
    %156 = tpu.matmul %155, %44, %cst_34 {dimension_numbers = #tpu.dot_dimension_numbers<[1], [0], [0], [1], [0, 0, 1, 1], [], []>} : vector<8x32xbf16>, vector<32x128xbf16>, vector<8x128xf32> -> vector<8x128xf32>
    %157 = arith.addf %39, %156 : vector<8x128xf32>
    %158 = arith.negf %157 : vector<8x128xf32>
    %159 = math.exp %158 : vector<8x128xf32>
    %cst_35 = arith.constant 1.000000e+00 : f32
    %160 = vector.broadcast %cst_35 : f32 to vector<8x128xf32>
    %161 = arith.addf %160, %159 : vector<8x128xf32>
    %162 = arith.divf %160, %161 : vector<8x128xf32>
    %163 = vector.extract_strided_slice %162 {offsets = [0, 0], sizes = [8, 32], strides = [1, 1]} : vector<8x128xf32> to vector<8x32xf32>
    %164 = vector.extract_strided_slice %162 {offsets = [0, 32], sizes = [8, 32], strides = [1, 1]} : vector<8x128xf32> to vector<8x32xf32>
    %165 = vector.extract_strided_slice %162 {offsets = [0, 96], sizes = [8, 32], strides = [1, 1]} : vector<8x128xf32> to vector<8x32xf32>
    %166 = vector.extract_strided_slice %157 {offsets = [0, 64], sizes = [8, 32], strides = [1, 1]} : vector<8x128xf32> to vector<8x32xf32>
    %167 = math.tanh %166 : vector<8x32xf32>
    %168 = arith.mulf %164, %152 : vector<8x32xf32>
    %169 = arith.mulf %163, %167 : vector<8x32xf32>
    %170 = arith.addf %168, %169 : vector<8x32xf32>
    %171 = math.tanh %170 : vector<8x32xf32>
    %172 = arith.mulf %165, %171 : vector<8x32xf32>
    %173 = arith.truncf %172 : vector<8x32xf32> to vector<8x32xbf16>
    %cst_36 = arith.constant dense<0.000000e+00> : vector<8x128xf32>
    %174 = tpu.matmul %173, %44, %cst_36 {dimension_numbers = #tpu.dot_dimension_numbers<[1], [0], [0], [1], [0, 0, 1, 1], [], []>} : vector<8x32xbf16>, vector<32x128xbf16>, vector<8x128xf32> -> vector<8x128xf32>
    %175 = arith.addf %43, %174 : vector<8x128xf32>
    %176 = arith.negf %175 : vector<8x128xf32>
    %177 = math.exp %176 : vector<8x128xf32>
    %cst_37 = arith.constant 1.000000e+00 : f32
    %178 = vector.broadcast %cst_37 : f32 to vector<8x128xf32>
    %179 = arith.addf %178, %177 : vector<8x128xf32>
    %180 = arith.divf %178, %179 : vector<8x128xf32>
    %181 = vector.extract_strided_slice %180 {offsets = [0, 0], sizes = [8, 32], strides = [1, 1]} : vector<8x128xf32> to vector<8x32xf32>
    %182 = vector.extract_strided_slice %180 {offsets = [0, 32], sizes = [8, 32], strides = [1, 1]} : vector<8x128xf32> to vector<8x32xf32>
    %183 = vector.extract_strided_slice %180 {offsets = [0, 96], sizes = [8, 32], strides = [1, 1]} : vector<8x128xf32> to vector<8x32xf32>
    %184 = vector.extract_strided_slice %175 {offsets = [0, 64], sizes = [8, 32], strides = [1, 1]} : vector<8x128xf32> to vector<8x32xf32>
    %185 = math.tanh %184 : vector<8x32xf32>
    %186 = arith.mulf %182, %170 : vector<8x32xf32>
    %187 = arith.mulf %181, %185 : vector<8x32xf32>
    %188 = arith.addf %186, %187 : vector<8x32xf32>
    %189 = math.tanh %188 : vector<8x32xf32>
    %190 = arith.mulf %183, %189 : vector<8x32xf32>
    %c0_38 = arith.constant 0 : index
    %c0_39 = arith.constant 0 : index
    %191 = vector.load %arg6[%c0_38, %c0_39] : memref<32x1xf32, #tpu.memory_space<vmem>>, vector<32x1xf32>
    %cst_40 = arith.constant dense<0.000000e+00> : vector<8x1xf32>
    %192 = tpu.matmul %190, %191, %cst_40 {dimension_numbers = #tpu.dot_dimension_numbers<[1], [0], [0], [1], [0, 0, 1, 1], [], []>} : vector<8x32xf32>, vector<32x1xf32>, vector<8x1xf32> -> vector<8x1xf32>
    %c0_41 = arith.constant 0 : index
    %c0_42 = arith.constant 0 : index
    %193 = vector.load %arg7[%c0_41, %c0_42] : memref<1x1xf32, #tpu.memory_space<vmem>>, vector<1x1xf32>
    %194 = vector.broadcast %193 : vector<1x1xf32> to vector<8x1xf32>
    %195 = arith.addf %192, %194 : vector<8x1xf32>
    %c0_43 = arith.constant 0 : index
    %c0_44 = arith.constant 0 : index
    %196 = vector.load %arg8[%c0_43, %c0_44] : memref<8x1xf32, #tpu.memory_space<vmem>>, vector<8x1xf32>
    tpu.vector_store %arg8[%c0_43, %c0_44], %195 {strides = array<i32>} : memref<8x1xf32, #tpu.memory_space<vmem>>, vector<8x1xf32>,
    return
  }
}

</mosaic_0001>

<llo_original>
// kernel: resnls_forward.1
$region0: #{resnls_forward.1}
  #allocation0 [shape = 'u32[]', space=smem, size = 0x4, offset = 0x4, fixed_abs, tag = 'smem constant byte address 0x4 - core index']
  #allocation1 [shape = 'u32[144,128]{1,0:T(1,128)}', space=vmem, size = 0x12000, scoped, tag = 'internal scratch']
  #allocation2 [shape = 'f32[1,1]{1,0:T(1,128)S(1)}', space=vmem, size = 0x200, scoped, tag = 'scoped memory for resnls_forward.1']
  %s0 = inlined_call_operand.vmem [shape: f32[8,128], index: 0, kind: input, shape index: {}]
  %s1 = inlined_call_operand.vmem [shape: bf16[128,256], index: 1, kind: input, shape index: {}]
  %s2 = inlined_call_operand.vmem [shape: f32[1,256], index: 2, kind: input, shape index: {}]
  %s3 = inlined_call_operand.hbm [shape: bf16[32,128], index: 3, kind: input, shape index: {}]
  %s4 = inlined_call_operand.vmem [shape: f32[1,128], index: 4, kind: input, shape index: {}]
  %s5 = inlined_call_operand.hbm [shape: bf16[32,128], index: 5, kind: input, shape index: {}]
  %s6 = inlined_call_operand.vmem [shape: f32[32,1], index: 6, kind: input, shape index: {}]
  %s7 = inlined_call_operand.<no memory space> [shape: f32[1,1], index: 7, kind: input, shape index: {}]
  %s8 = inlined_call_operand.vmem [shape: f32[8,1], index: 8, kind: output, shape index: {}]
  %s9 = sld [smem:[#allocation0]]
  $region50: #{resnls_forward.1} parent=0
    _
  %s11 = ssub.s32 1, %s9
  %s12 = scalar_select 0, %s11, %s9
  %v13 = vstv %s7
  %14 = vst [vmem:[#allocation2] sm:$0x1] %v13
  $region1: #{resnls_forward.1} parent=0
    #allocation3 [shape = 'u8[8192]{0}', space=vmem, size = 0x2000, scoped, tag = 'input window, operand 3, single buffered']
    #allocation4 [shape = 's32[1]{0}', space=sflag, size = 0x4, scoped, tag = 'scoped memory for resnls_forward.1']
    #allocation5 [shape = 'u8[8192]{0}', space=vmem, size = 0x2000, scoped, tag = 'input window, operand 5, single buffered']
    #allocation6 [shape = 's32[1]{0}', space=sflag, size = 0x4, scoped, tag = 'scoped memory for resnls_forward.1']
    %15 = vsyncpa [#allocation4], 0
    %16 = vsyncpa [#allocation6], 0
    // Predicated region
    $region2: #{resnls_forward.1} parent=1 // pred_check
      _
    $region3: #{resnls_forward.1} parent=1 // pred_check_branch
      %18 = sbr.rel (0) target = $region5
    $region4: #{resnls_forward.1} parent=1 // pred_region
      _
    $region5: #{resnls_forward.1} parent=1 // pred_fallthru
      _
    // Predicated region
    $region6: #{resnls_forward.1} parent=1 // pred_check
      _
    $region7: #{resnls_forward.1} parent=1 // pred_check_branch
      %20 = sbr.rel (0) target = $region9
    $region8: #{resnls_forward.1} parent=1 // pred_region
      _
    $region9: #{resnls_forward.1} parent=1 // pred_fallthru
      _
    // Predicated region
    $region10: #{resnls_forward.1} parent=1 // pred_check
      _
    $region11: #{resnls_forward.1} parent=1 // pred_check_branch
      %22 = sbr.rel (0) target = $region13
    $region12: #{resnls_forward.1} parent=1 // pred_region
      _
    $region13: #{resnls_forward.1} parent=1 // pred_fallthru
      _
    // Predicated region
    $region14: #{resnls_forward.1} parent=1 // pred_check
      _
    $region15: #{resnls_forward.1} parent=1 // pred_check_branch
      %24 = sbr.rel (0) target = $region17
    $region16: #{resnls_forward.1} parent=1 // pred_region
      %s26 = ssub.s32 256, 256
      %27 = vsyncadd [#allocation4], %s26
      %s28 = sshll.u32 [#allocation3], 4
      %s29 = int_to_ptr.vmem [resolvable:$true] %s28
      %34 = dma.hbm_to_vmem [thread:$0]  %s3, 256, %s29, [#allocation4], 64, 64, 4
    $region17: #{resnls_forward.1} parent=1 // pred_fallthru
      _
    // Predicated region
    $region18: #{resnls_forward.1} parent=1 // pred_check
      _
    $region19: #{resnls_forward.1} parent=1 // pred_check_branch
      %36 = sbr.rel (0) target = $region21
    $region20: #{resnls_forward.1} parent=1 // pred_region
      _
    $region21: #{resnls_forward.1} parent=1 // pred_fallthru
      _
    // Predicated region
    $region22: #{resnls_forward.1} parent=1 // pred_check
      _
    $region23: #{resnls_forward.1} parent=1 // pred_check_branch
      %38 = sbr.rel (0) target = $region25
    $region24: #{resnls_forward.1} parent=1 // pred_region
      %s40 = ssub.s32 256, 256
      %41 = vsyncadd [#allocation6], %s40
      %s42 = sshll.u32 [#allocation5], 4
      %s43 = int_to_ptr.vmem [resolvable:$true] %s42
      %48 = dma.hbm_to_vmem [thread:$0]  %s5, 256, %s43, [#allocation6], 64, 64, 4
    $region25: #{resnls_forward.1} parent=1 // pred_fallthru
      _
    // Predicated region
    $region26: #{resnls_forward.1} parent=1 // pred_check
      _
    $region27: #{resnls_forward.1} parent=1 // pred_check_branch
      %50 = sbr.rel (0) target = $region29
    $region28: #{resnls_forward.1} parent=1 // pred_region
      _
    $region29: #{resnls_forward.1} parent=1 // pred_fallthru
      _
    // Predicated region
    $region30: #{resnls_forward.1} parent=1 // pred_check
      _
    $region31: #{resnls_forward.1} parent=1 // pred_check_branch
      %52 = sbr.rel (0) target = $region33
    $region32: #{resnls_forward.1} parent=1 // pred_region
      _
    $region33: #{resnls_forward.1} parent=1 // pred_fallthru
      _
    // Predicated region
    $region34: #{resnls_forward.1} parent=1 // pred_check
      _
    $region35: #{resnls_forward.1} parent=1 // pred_check_branch
      %54 = sbr.rel (0) target = $region37
    $region36: #{resnls_forward.1} parent=1 // pred_region
      %55 = dma.done [#allocation4], 256
    $region37: #{resnls_forward.1} parent=1 // pred_fallthru
      _
    // Predicated region
    $region38: #{resnls_forward.1} parent=1 // pred_check
      _
    $region39: #{resnls_forward.1} parent=1 // pred_check_branch
      %57 = sbr.rel (0) target = $region41
    $region40: #{resnls_forward.1} parent=1 // pred_region
      %58 = dma.done [#allocation6], 256
    $region41: #{resnls_forward.1} parent=1 // pred_fallthru
      _
    %v60 = vld [vmem:[%s0] sm:$0xff]
    %v61 = vpack.c.bf16 %v60, %v60
    %v62 = vld [vmem:[%s1] sm:$0xff]
    %v63 = vld [vmem:[%s1 + $0x8] sm:$0xff]
    %v64 = vld [vmem:[%s1 + $0x10] sm:$0xff]
    %v65 = vld [vmem:[%s1 + $0x18] sm:$0xff]
    %v66 = vld [vmem:[%s1 + $0x20] sm:$0xff]
    %v67 = vld [vmem:[%s1 + $0x28] sm:$0xff]
    %v68 = vld [vmem:[%s1 + $0x30] sm:$0xff]
    %v69 = vld [vmem:[%s1 + $0x38] sm:$0xff]
    %v70 = vld [vmem:[%s1 + $0x40] sm:$0xff]
    %v71 = vld [vmem:[%s1 + $0x48] sm:$0xff]
    %v72 = vld [vmem:[%s1 + $0x50] sm:$0xff]
    %v73 = vld [vmem:[%s1 + $0x58] sm:$0xff]
    %v74 = vld [vmem:[%s1 + $0x60] sm:$0xff]
    %v75 = vld [vmem:[%s1 + $0x68] sm:$0xff]
    %v76 = vld [vmem:[%s1 + $0x70] sm:$0xff]
    %v77 = vld [vmem:[%s1 + $0x78] sm:$0xff]
    %v78 = vld [vmem:[%s2] sm:$0x3]
    %v80 = vlaneseq
    %v81 = vshrl.u32 %v80, 7
    %v82 = vsub.s32 0, %v81
    %v83 = vrot.slane %v78, %v82
    %v84 = vlaneseq
    %v85 = vshrl.u32 %v84, 7
    %v86 = vsub.s32 1, %v85
    %v87 = vrot.slane %v78, %v86
    %v106 = vunpack.c.l.b16 %v62
    %v107 = vunpack.c.h.b16 %v62
    %v108 = vunpack.c.l.b16 %v63
    %v109 = vunpack.c.h.b16 %v63
    %v110 = vunpack.c.l.b16 %v64
    %v111 = vunpack.c.h.b16 %v64
    %v112 = vunpack.c.l.b16 %v65
    %v113 = vunpack.c.h.b16 %v65
    %v114 = vunpack.c.l.b16 %v66
    %v115 = vunpack.c.h.b16 %v66
    %v116 = vunpack.c.l.b16 %v67
    %v117 = vunpack.c.h.b16 %v67
    %v118 = vunpack.c.l.b16 %v68
    %v119 = vunpack.c.h.b16 %v68
    %v120 = vunpack.c.l.b16 %v69
    %v121 = vunpack.c.h.b16 %v69
    %v122 = vunpack.c.l.b16 %v70
    %v123 = vunpack.c.h.b16 %v70
    %v124 = vunpack.c.l.b16 %v71
    %v125 = vunpack.c.h.b16 %v71
    %v126 = vunpack.c.l.b16 %v72
    %v127 = vunpack.c.h.b16 %v72
    %v128 = vunpack.c.l.b16 %v73
    %v129 = vunpack.c.h.b16 %v73
    %v130 = vunpack.c.l.b16 %v74
    %v131 = vunpack.c.h.b16 %v74
    %v132 = vunpack.c.l.b16 %v75
    %v133 = vunpack.c.h.b16 %v75
    %v134 = vunpack.c.l.b16 %v76
    %v135 = vunpack.c.h.b16 %v76
    %v136 = vunpack.c.l.b16 %v77
    %v137 = vunpack.c.h.b16 %v77
    %v138 = vpack.c.b16 %v108, %v106
    %v139 = vpack.c.b16 %v109, %v107
    %v140 = vpack.c.b16 %v112, %v110
    %v141 = vpack.c.b16 %v113, %v111
    %v142 = vpack.c.b16 %v116, %v114
    %v143 = vpack.c.b16 %v117, %v115
    %v144 = vpack.c.b16 %v120, %v118
    %v145 = vpack.c.b16 %v121, %v119
    %v146 = vpack.c.b16 %v124, %v122
    %v147 = vpack.c.b16 %v125, %v123
    %v148 = vpack.c.b16 %v128, %v126
    %v149 = vpack.c.b16 %v129, %v127
    %v150 = vpack.c.b16 %v132, %v130
    %v151 = vpack.c.b16 %v133, %v131
    %v152 = vpack.c.b16 %v136, %v134
    %v153 = vpack.c.b16 %v137, %v135
    %170 = vmatprep.subr.bf16.mxu0 %v153
    %171 = vmatpush1.bf16.msra.mxu0 %v152
    %172 = vmatprep.subr.bf16.mxu0 %v151
    %173 = vmatpush1.bf16.msra.mxu0 %v150
    %174 = vmatprep.subr.bf16.mxu0 %v149
    %175 = vmatpush1.bf16.msra.mxu0 %v148
    %176 = vmatprep.subr.bf16.mxu0 %v147
    %177 = vmatpush1.bf16.msra.mxu0 %v146
    %178 = vmatprep.subr.bf16.mxu0 %v145
    %179 = vmatpush1.bf16.msra.mxu0 %v144
    %180 = vmatprep.subr.bf16.mxu0 %v143
    %181 = vmatpush1.bf16.msra.mxu0 %v142
    %182 = vmatprep.subr.bf16.mxu0 %v141
    %183 = vmatpush1.bf16.msra.mxu0 %v140
    %184 = vmatprep.subr.bf16.mxu0 %v139
    %185 = vmatpush1.bf16.msra.mxu0 %v138
    %186 = vmatprep.subr.bf16.mxu0 0
    %187 = vmatpush2.bf16.msra.mxu0 0
    %188 = vmatprep.subr.bf16.mxu0 0
    %189 = vmatpush2.bf16.msra.mxu0 0
    %190 = vmatprep.subr.bf16.mxu0 0
    %191 = vmatpush2.bf16.msra.mxu0 0
    %192 = vmatprep.subr.bf16.mxu0 0
    %193 = vmatpush2.bf16.msra.mxu0 0
    %194 = vmatprep.subr.bf16.mxu0 0
    %195 = vmatpush2.bf16.msra.mxu0 0
    %196 = vmatprep.subr.bf16.mxu0 0
    %197 = vmatpush2.bf16.msra.mxu0 0
    %198 = vmatprep.subr.bf16.mxu0 0
    %199 = vmatpush2.bf16.msra.mxu0 0
    %200 = vmatprep.subr.bf16.mxu0 0
    %201 = vmatpush2.bf16.msra.mxu0 0
    %202 = vmatprep.mubr.bf16.mxu0 0
    %203 = vmatmul.mubr.bf16.gmra.mxu0 %v61
    %v204 = vpop.f32.mrf.mxu0
    %v205 = vadd.f32 %v83, %v204
    %v206 = vpop.f32.mrf.mxu0
    %v207 = vadd.f32 %v87, %v206
    %v208 = vpop.f32.mrf.mxu0
    %v209 = vpop.f32.mrf.mxu0
    %210 = vdwg.mxu0
    %v211 = vmax.f32 %v205, 0.0
    %v212 = vmax.f32 %v207, 0.0
    %v213 = vpack.c.bf16 %v211, %v211
    %v214 = vpack.c.bf16 %v212, %v212
    %v215 = vld [vmem:[#allocation3] sm:$0xf]
    %v216 = vld [vmem:[#allocation3 + $0x4] sm:$0xf]
    %v217 = vld [vmem:[#allocation3 + $0x8] sm:$0xf]
    %v218 = vld [vmem:[#allocation3 + $0xc] sm:$0xf]
    %v219 = vld [vmem:[%s4] sm:$0x1]
    %v221 = vlaneseq
    %v222 = vshrl.u32 %v221, 7
    %v223 = vsub.s32 0, %v222
    %v224 = vrot.slane %v219, %v223
    %v230 = vunpack.c.l.b16 %v215
    %v231 = vunpack.c.l.b16 %v216
    %v232 = vunpack.c.l.b16 %v217
    %v233 = vunpack.c.l.b16 %v218
    %v234 = vpack.c.b16 %v231, %v230
    %v235 = vpack.c.b16 %v233, %v232
    %vm238 = vcmask 261120
    %v240 = vsel %vm238, %v213, 0
    %242 = vmatprep.subr.bf16.mxu0 0
    %243 = vmatpush1.bf16.msra.mxu0 0
    %244 = vmatprep.subr.bf16.mxu0 0
    %245 = vmatpush1.bf16.msra.mxu0 0
    %246 = vmatprep.subr.bf16.mxu0 0
    %247 = vmatpush1.bf16.msra.mxu0 0
    %248 = vmatprep.subr.bf16.mxu0 0
    %249 = vmatpush1.bf16.msra.mxu0 0
    %250 = vmatprep.subr.bf16.mxu0 0
    %251 = vmatpush1.bf16.msra.mxu0 0
    %252 = vmatprep.subr.bf16.mxu0 0
    %253 = vmatpush1.bf16.msra.mxu0 0
    %254 = vmatprep.subr.bf16.mxu0 0
    %255 = vmatpush1.bf16.msra.mxu0 %v235
    %256 = vmatprep.subr.bf16.mxu0 0
    %257 = vmatpush1.bf16.msra.mxu0 %v234
    %258 = vmatprep.subr.bf16.mxu0 0
    %259 = vmatpush2.bf16.msra.mxu0 0
    %260 = vmatprep.subr.bf16.mxu0 0
    %261 = vmatpush2.bf16.msra.mxu0 0
    %262 = vmatprep.subr.bf16.mxu0 0
    %263 = vmatpush2.bf16.msra.mxu0 0
    %264 = vmatprep.subr.bf16.mxu0 0
    %265 = vmatpush2.bf16.msra.mxu0 0
    %266 = vmatprep.subr.bf16.mxu0 0
    %267 = vmatpush2.bf16.msra.mxu0 0
    %268 = vmatprep.subr.bf16.mxu0 0
    %269 = vmatpush2.bf16.msra.mxu0 0
    %270 = vmatprep.subr.bf16.mxu0 0
    %271 = vmatpush2.bf16.msra.mxu0 0
    %272 = vmatprep.subr.bf16.mxu0 0
    %273 = vmatpush2.bf16.msra.mxu0 0
    %274 = vmatprep.mubr.bf16.mxu0 0
    %275 = vmatmul.mubr.bf16.gmra.mxu0 %v240
    %v276 = vpop.f32.mrf.mxu0
    %v277 = vadd.f32 %v224, %v276
    %v278 = vpop.f32.mrf.mxu0
    %v279 = vpop.f32.mrf.mxu0
    %v280 = vpop.f32.mrf.mxu0
    %281 = vdwg.mxu0
    %283 = vrot.lane.b32.xlu0 %v213, 96
    %v284 = vpop.permute.xlu0 %283
    %v286 = vsel %vm238, %v284, 0
    %288 = vmatprep.subr.bf16.mxu0 0
    %289 = vmatpush1.bf16.msra.mxu0 0
    %290 = vmatprep.subr.bf16.mxu0 0
    %291 = vmatpush1.bf16.msra.mxu0 0
    %292 = vmatprep.subr.bf16.mxu0 0
    %293 = vmatpush1.bf16.msra.mxu0 0
    %294 = vmatprep.subr.bf16.mxu0 0
    %295 = vmatpush1.bf16.msra.mxu0 0
    %296 = vmatprep.subr.bf16.mxu0 0
    %297 = vmatpush1.bf16.msra.mxu0 0
    %298 = vmatprep.subr.bf16.mxu0 0
    %299 = vmatpush1.bf16.msra.mxu0 0
    %300 = vmatprep.subr.bf16.mxu0 0
    %301 = vmatpush1.bf16.msra.mxu0 %v235
    %302 = vmatprep.subr.bf16.mxu0 0
    %303 = vmatpush1.bf16.msra.mxu0 %v234
    %304 = vmatprep.subr.bf16.mxu0 0
    %305 = vmatpush2.bf16.msra.mxu0 0
    %306 = vmatprep.subr.bf16.mxu0 0
    %307 = vmatpush2.bf16.msra.mxu0 0
    %308 = vmatprep.subr.bf16.mxu0 0
    %309 = vmatpush2.bf16.msra.mxu0 0
    %310 = vmatprep.subr.bf16.mxu0 0
    %311 = vmatpush2.bf16.msra.mxu0 0
    %312 = vmatprep.subr.bf16.mxu0 0
    %313 = vmatpush2.bf16.msra.mxu0 0
    %314 = vmatprep.subr.bf16.mxu0 0
    %315 = vmatpush2.bf16.msra.mxu0 0
    %316 = vmatprep.subr.bf16.mxu0 0
    %317 = vmatpush2.bf16.msra.mxu0 0
    %318 = vmatprep.subr.bf16.mxu0 0
    %319 = vmatpush2.bf16.msra.mxu0 0
    %320 = vmatprep.mubr.bf16.mxu0 0
    %321 = vmatmul.mubr.bf16.gmra.mxu0 %v286
    %v322 = vpop.f32.mrf.mxu0
    %v323 = vadd.f32 %v224, %v322
    %v324 = vpop.f32.mrf.mxu0
    %v325 = vpop.f32.mrf.mxu0
    %v326 = vpop.f32.mrf.mxu0
    %327 = vdwg.mxu0
    %328 = vrot.lane.b32.xlu0 %v213, 64
    %v329 = vpop.permute.xlu0 %328
    %v331 = vsel %vm238, %v329, 0
    %333 = vmatprep.subr.bf16.mxu0 0
    %334 = vmatpush1.bf16.msra.mxu0 0
    %335 = vmatprep.subr.bf16.mxu0 0
    %336 = vmatpush1.bf16.msra.mxu0 0
    %337 = vmatprep.subr.bf16.mxu0 0
    %338 = vmatpush1.bf16.msra.mxu0 0
    %339 = vmatprep.subr.bf16.mxu0 0
    %340 = vmatpush1.bf16.msra.mxu0 0
    %341 = vmatprep.subr.bf16.mxu0 0
    %342 = vmatpush1.bf16.msra.mxu0 0
    %343 = vmatprep.subr.bf16.mxu0 0
    %344 = vmatpush1.bf16.msra.mxu0 0
    %345 = vmatprep.subr.bf16.mxu0 0
    %346 = vmatpush1.bf16.msra.mxu0 %v235
    %347 = vmatprep.subr.bf16.mxu0 0
    %348 = vmatpush1.bf16.msra.mxu0 %v234
    %349 = vmatprep.subr.bf16.mxu0 0
    %350 = vmatpush2.bf16.msra.mxu0 0
    %351 = vmatprep.subr.bf16.mxu0 0
    %352 = vmatpush2.bf16.msra.mxu0 0
    %353 = vmatprep.subr.bf16.mxu0 0
    %354 = vmatpush2.bf16.msra.mxu0 0
    %355 = vmatprep.subr.bf16.mxu0 0
    %356 = vmatpush2.bf16.msra.mxu0 0
    %357 = vmatprep.subr.bf16.mxu0 0
    %358 = vmatpush2.bf16.msra.mxu0 0
    %359 = vmatprep.subr.bf16.mxu0 0
    %360 = vmatpush2.bf16.msra.mxu0 0
    %361 = vmatprep.subr.bf16.mxu0 0
    %362 = vmatpush2.bf16.msra.mxu0 0
    %363 = vmatprep.subr.bf16.mxu0 0
    %364 = vmatpush2.bf16.msra.mxu0 0
    %365 = vmatprep.mubr.bf16.mxu0 0
    %366 = vmatmul.mubr.bf16.gmra.mxu0 %v331
    %v367 = vpop.f32.mrf.mxu0
    %v368 = vadd.f32 %v224, %v367
    %v369 = vpop.f32.mrf.mxu0
    %v370 = vpop.f32.mrf.mxu0
    %v371 = vpop.f32.mrf.mxu0
    %372 = vdwg.mxu0
    %373 = vrot.lane.b32.xlu0 %v213, 32
    %v374 = vpop.permute.xlu0 %373
    %v376 = vsel %vm238, %v374, 0
    %378 = vmatprep.subr.bf16.mxu0 0
    %379 = vmatpush1.bf16.msra.mxu0 0
    %380 = vmatprep.subr.bf16.mxu0 0
    %381 = vmatpush1.bf16.msra.mxu0 0
    %382 = vmatprep.subr.bf16.mxu0 0
    %383 = vmatpush1.bf16.msra.mxu0 0
    %384 = vmatprep.subr.bf16.mxu0 0
    %385 = vmatpush1.bf16.msra.mxu0 0
    %386 = vmatprep.subr.bf16.mxu0 0
    %387 = vmatpush1.bf16.msra.mxu0 0
    %388 = vmatprep.subr.bf16.mxu0 0
    %389 = vmatpush1.bf16.msra.mxu0 0
    %390 = vmatprep.subr.bf16.mxu0 0
    %391 = vmatpush1.bf16.msra.mxu0 %v235
    %392 = vmatprep.subr.bf16.mxu0 0
    %393 = vmatpush1.bf16.msra.mxu0 %v234
    %394 = vmatprep.subr.bf16.mxu0 0
    %395 = vmatpush2.bf16.msra.mxu0 0
    %396 = vmatprep.subr.bf16.mxu0 0
    %397 = vmatpush2.bf16.msra.mxu0 0
    %398 = vmatprep.subr.bf16.mxu0 0
    %399 = vmatpush2.bf16.msra.mxu0 0
    %400 = vmatprep.subr.bf16.mxu0 0
    %401 = vmatpush2.bf16.msra.mxu0 0
    %402 = vmatprep.subr.bf16.mxu0 0
    %403 = vmatpush2.bf16.msra.mxu0 0
    %404 = vmatprep.subr.bf16.mxu0 0
    %405 = vmatpush2.bf16.msra.mxu0 0
    %406 = vmatprep.subr.bf16.mxu0 0
    %407 = vmatpush2.bf16.msra.mxu0 0
    %408 = vmatprep.subr.bf16.mxu0 0
    %409 = vmatpush2.bf16.msra.mxu0 0
    %410 = vmatprep.mubr.bf16.mxu0 0
    %411 = vmatmul.mubr.bf16.gmra.mxu0 %v376
    %v412 = vpop.f32.mrf.mxu0
    %v413 = vadd.f32 %v224, %v412
    %v414 = vpop.f32.mrf.mxu0
    %v415 = vpop.f32.mrf.mxu0
    %v416 = vpop.f32.mrf.mxu0
    %417 = vdwg.mxu0
    %v419 = vsel %vm238, %v214, 0
    %421 = vmatprep.subr.bf16.mxu0 0
    %422 = vmatpush1.bf16.msra.mxu0 0
    %423 = vmatprep.subr.bf16.mxu0 0
    %424 = vmatpush1.bf16.msra.mxu0 0
    %425 = vmatprep.subr.bf16.mxu0 0
    %426 = vmatpush1.bf16.msra.mxu0 0
    %427 = vmatprep.subr.bf16.mxu0 0
    %428 = vmatpush1.bf16.msra.mxu0 0
    %429 = vmatprep.subr.bf16.mxu0 0
    %430 = vmatpush1.bf16.msra.mxu0 0
    %431 = vmatprep.subr.bf16.mxu0 0
    %432 = vmatpush1.bf16.msra.mxu0 0
    %433 = vmatprep.subr.bf16.mxu0 0
    %434 = vmatpush1.bf16.msra.mxu0 %v235
    %435 = vmatprep.subr.bf16.mxu0 0
    %436 = vmatpush1.bf16.msra.mxu0 %v234
    %437 = vmatprep.subr.bf16.mxu0 0
    %438 = vmatpush2.bf16.msra.mxu0 0
    %439 = vmatprep.subr.bf16.mxu0 0
    %440 = vmatpush2.bf16.msra.mxu0 0
    %441 = vmatprep.subr.bf16.mxu0 0
    %442 = vmatpush2.bf16.msra.mxu0 0
    %443 = vmatprep.subr.bf16.mxu0 0
    %444 = vmatpush2.bf16.msra.mxu0 0
    %445 = vmatprep.subr.bf16.mxu0 0
    %446 = vmatpush2.bf16.msra.mxu0 0
    %447 = vmatprep.subr.bf16.mxu0 0
    %448 = vmatpush2.bf16.msra.mxu0 0
    %449 = vmatprep.subr.bf16.mxu0 0
    %450 = vmatpush2.bf16.msra.mxu0 0
    %451 = vmatprep.subr.bf16.mxu0 0
    %452 = vmatpush2.bf16.msra.mxu0 0
    %453 = vmatprep.mubr.bf16.mxu0 0
    %454 = vmatmul.mubr.bf16.gmra.mxu0 %v419
    %v455 = vpop.f32.mrf.mxu0
    %v456 = vadd.f32 %v224, %v455
    %v457 = vpop.f32.mrf.mxu0
    %v458 = vpop.f32.mrf.mxu0
    %v459 = vpop.f32.mrf.mxu0
    %460 = vdwg.mxu0
    %462 = vrot.lane.b32.xlu0 %v214, 96
    %v463 = vpop.permute.xlu0 %462
    %v465 = vsel %vm238, %v463, 0
    %467 = vmatprep.subr.bf16.mxu0 0
    %468 = vmatpush1.bf16.msra.mxu0 0
    %469 = vmatprep.subr.bf16.mxu0 0
    %470 = vmatpush1.bf16.msra.mxu0 0
    %471 = vmatprep.subr.bf16.mxu0 0
    %472 = vmatpush1.bf16.msra.mxu0 0
    %473 = vmatprep.subr.bf16.mxu0 0
    %474 = vmatpush1.bf16.msra.mxu0 0
    %475 = vmatprep.subr.bf16.mxu0 0
    %476 = vmatpush1.bf16.msra.mxu0 0
    %477 = vmatprep.subr.bf16.mxu0 0
    %478 = vmatpush1.bf16.msra.mxu0 0
    %479 = vmatprep.subr.bf16.mxu0 0
    %480 = vmatpush1.bf16.msra.mxu0 %v235
    %481 = vmatprep.subr.bf16.mxu0 0
    %482 = vmatpush1.bf16.msra.mxu0 %v234
    %483 = vmatprep.subr.bf16.mxu0 0
    %484 = vmatpush2.bf16.msra.mxu0 0
    %485 = vmatprep.subr.bf16.mxu0 0
    %486 = vmatpush2.bf16.msra.mxu0 0
    %487 = vmatprep.subr.bf16.mxu0 0
    %488 = vmatpush2.bf16.msra.mxu0 0
    %489 = vmatprep.subr.bf16.mxu0 0
    %490 = vmatpush2.bf16.msra.mxu0 0
    %491 = vmatprep.subr.bf16.mxu0 0
    %492 = vmatpush2.bf16.msra.mxu0 0
    %493 = vmatprep.subr.bf16.mxu0 0
    %494 = vmatpush2.bf16.msra.mxu0 0
    %495 = vmatprep.subr.bf16.mxu0 0
    %496 = vmatpush2.bf16.msra.mxu0 0
    %497 = vmatprep.subr.bf16.mxu0 0
    %498 = vmatpush2.bf16.msra.mxu0 0
    %499 = vmatprep.mubr.bf16.mxu0 0
    %500 = vmatmul.mubr.bf16.gmra.mxu0 %v465
    %v501 = vpop.f32.mrf.mxu0
    %v502 = vadd.f32 %v224, %v501
    %v503 = vpop.f32.mrf.mxu0
    %v504 = vpop.f32.mrf.mxu0
    %v505 = vpop.f32.mrf.mxu0
    %506 = vdwg.mxu0
    %507 = vrot.lane.b32.xlu0 %v214, 64
    %v508 = vpop.permute.xlu0 %507
    %v510 = vsel %vm238, %v508, 0
    %512 = vmatprep.subr.bf16.mxu0 0
    %513 = vmatpush1.bf16.msra.mxu0 0
    %514 = vmatprep.subr.bf16.mxu0 0
    %515 = vmatpush1.bf16.msra.mxu0 0
    %516 = vmatprep.subr.bf16.mxu0 0
    %517 = vmatpush1.bf16.msra.mxu0 0
    %518 = vmatprep.subr.bf16.mxu0 0
    %519 = vmatpush1.bf16.msra.mxu0 0
    %520 = vmatprep.subr.bf16.mxu0 0
    %521 = vmatpush1.bf16.msra.mxu0 0
    %522 = vmatprep.subr.bf16.mxu0 0
    %523 = vmatpush1.bf16.msra.mxu0 0
    %524 = vmatprep.subr.bf16.mxu0 0
    %525 = vmatpush1.bf16.msra.mxu0 %v235
    %526 = vmatprep.subr.bf16.mxu0 0
    %527 = vmatpush1.bf16.msra.mxu0 %v234
    %528 = vmatprep.subr.bf16.mxu0 0
    %529 = vmatpush2.bf16.msra.mxu0 0
    %530 = vmatprep.subr.bf16.mxu0 0
    %531 = vmatpush2.bf16.msra.mxu0 0
    %532 = vmatprep.subr.bf16.mxu0 0
    %533 = vmatpush2.bf16.msra.mxu0 0
    %534 = vmatprep.subr.bf16.mxu0 0
    %535 = vmatpush2.bf16.msra.mxu0 0
    %536 = vmatprep.subr.bf16.mxu0 0
    %537 = vmatpush2.bf16.msra.mxu0 0
    %538 = vmatprep.subr.bf16.mxu0 0
    %539 = vmatpush2.bf16.msra.mxu0 0
    %540 = vmatprep.subr.bf16.mxu0 0
    %541 = vmatpush2.bf16.msra.mxu0 0
    %542 = vmatprep.subr.bf16.mxu0 0
    %543 = vmatpush2.bf16.msra.mxu0 0
    %544 = vmatprep.mubr.bf16.mxu0 0
    %545 = vmatmul.mubr.bf16.gmra.mxu0 %v510
    %v546 = vpop.f32.mrf.mxu0
    %v547 = vadd.f32 %v224, %v546
    %v548 = vpop.f32.mrf.mxu0
    %v549 = vpop.f32.mrf.mxu0
    %v550 = vpop.f32.mrf.mxu0
    %551 = vdwg.mxu0
    %552 = vrot.lane.b32.xlu0 %v214, 32
    %v553 = vpop.permute.xlu0 %552
    %v555 = vsel %vm238, %v553, 0
    %557 = vmatprep.subr.bf16.mxu0 0
    %558 = vmatpush1.bf16.msra.mxu0 0
    %559 = vmatprep.subr.bf16.mxu0 0
    %560 = vmatpush1.bf16.msra.mxu0 0
    %561 = vmatprep.subr.bf16.mxu0 0
    %562 = vmatpush1.bf16.msra.mxu0 0
    %563 = vmatprep.subr.bf16.mxu0 0
    %564 = vmatpush1.bf16.msra.mxu0 0
    %565 = vmatprep.subr.bf16.mxu0 0
    %566 = vmatpush1.bf16.msra.mxu0 0
    %567 = vmatprep.subr.bf16.mxu0 0
    %568 = vmatpush1.bf16.msra.mxu0 0
    %569 = vmatprep.subr.bf16.mxu0 0
    %570 = vmatpush1.bf16.msra.mxu0 %v235
    %571 = vmatprep.subr.bf16.mxu0 0
    %572 = vmatpush1.bf16.msra.mxu0 %v234
    %573 = vmatprep.subr.bf16.mxu0 0
    %574 = vmatpush2.bf16.msra.mxu0 0
    %575 = vmatprep.subr.bf16.mxu0 0
    %576 = vmatpush2.bf16.msra.mxu0 0
    %577 = vmatprep.subr.bf16.mxu0 0
    %578 = vmatpush2.bf16.msra.mxu0 0
    %579 = vmatprep.subr.bf16.mxu0 0
    %580 = vmatpush2.bf16.msra.mxu0 0
    %581 = vmatprep.subr.bf16.mxu0 0
    %582 = vmatpush2.bf16.msra.mxu0 0
    %583 = vmatprep.subr.bf16.mxu0 0
    %584 = vmatpush2.bf16.msra.mxu0 0
    %585 = vmatprep.subr.bf16.mxu0 0
    %586 = vmatpush2.bf16.msra.mxu0 0
    %587 = vmatprep.subr.bf16.mxu0 0
    %588 = vmatpush2.bf16.msra.mxu0 0
    %589 = vmatprep.mubr.bf16.mxu0 0
    %590 = vmatmul.mubr.bf16.gmra.mxu0 %v555
    %v591 = vpop.f32.mrf.mxu0
    %v592 = vadd.f32 %v224, %v591
    %v593 = vpop.f32.mrf.mxu0
    %v594 = vpop.f32.mrf.mxu0
    %v595 = vpop.f32.mrf.mxu0
    %596 = vdwg.mxu0
    %v597 = vld [vmem:[#allocation5] sm:$0xf]
    %v598 = vld [vmem:[#allocation5 + $0x4] sm:$0xf]
    %v599 = vld [vmem:[#allocation5 + $0x8] sm:$0xf]
    %v600 = vld [vmem:[#allocation5 + $0xc] sm:$0xf]
    %v605 = vunpack.c.l.b16 %v597
    %v606 = vunpack.c.l.b16 %v598
    %v607 = vunpack.c.l.b16 %v599
    %v608 = vunpack.c.l.b16 %v600
    %v609 = vpack.c.b16 %v606, %v605
    %v610 = vpack.c.b16 %v608, %v607
    %v614 = vsel %vm238, 0, 0
    %616 = vmatprep.subr.bf16.mxu0 0
    %617 = vmatpush1.bf16.msra.mxu0 0
    %618 = vmatprep.subr.bf16.mxu0 0
    %619 = vmatpush1.bf16.msra.mxu0 0
    %620 = vmatprep.subr.bf16.mxu0 0
    %621 = vmatpush1.bf16.msra.mxu0 0
    %622 = vmatprep.subr.bf16.mxu0 0
    %623 = vmatpush1.bf16.msra.mxu0 0
    %624 = vmatprep.subr.bf16.mxu0 0
    %625 = vmatpush1.bf16.msra.mxu0 0
    %626 = vmatprep.subr.bf16.mxu0 0
    %627 = vmatpush1.bf16.msra.mxu0 0
    %628 = vmatprep.subr.bf16.mxu0 0
    %629 = vmatpush1.bf16.msra.mxu0 %v610
    %630 = vmatprep.subr.bf16.mxu0 0
    %631 = vmatpush1.bf16.msra.mxu0 %v609
    %632 = vmatprep.subr.bf16.mxu0 0
    %633 = vmatpush2.bf16.msra.mxu0 0
    %634 = vmatprep.subr.bf16.mxu0 0
    %635 = vmatpush2.bf16.msra.mxu0 0
    %636 = vmatprep.subr.bf16.mxu0 0
    %637 = vmatpush2.bf16.msra.mxu0 0
    %638 = vmatprep.subr.bf16.mxu0 0
    %639 = vmatpush2.bf16.msra.mxu0 0
    %640 = vmatprep.subr.bf16.mxu0 0
    %641 = vmatpush2.bf16.msra.mxu0 0
    %642 = vmatprep.subr.bf16.mxu0 0
    %643 = vmatpush2.bf16.msra.mxu0 0
    %644 = vmatprep.subr.bf16.mxu0 0
    %645 = vmatpush2.bf16.msra.mxu0 0
    %646 = vmatprep.subr.bf16.mxu0 0
    %647 = vmatpush2.bf16.msra.mxu0 0
    %648 = vmatprep.mubr.bf16.mxu0 0
    %649 = vmatmul.mubr.bf16.gmra.mxu0 %v614
    %v650 = vpop.f32.mrf.mxu0
    %v651 = vadd.f32 0.0, %v650
    %v652 = vpop.f32.mrf.mxu0
    %v653 = vpop.f32.mrf.mxu0
    %v654 = vpop.f32.mrf.mxu0
    %655 = vdwg.mxu0
    %v656 = vadd.f32 %v277, %v651
    %v657 = vxor.u32 %v656, 2147483648
    %v658 = vmul.f32 %v657, 1.442695
    %v659 = vpow.pop %v658
    %v660 = vadd.f32 %v659, 1.0
    %v661 = vrcp.pop %v660
    %v662 = vmul.f32 1.0, %v661
    %v663 = vtanh.pop %v656
    %v664 = vmul.f32 %v662, 0.0
    %666 = vrot.lane.b32.xlu0 %v663, 64
    %v667 = vpop.permute.xlu0 %666
    %v669 = vmul.f32 %v662, %v667
    %671 = vrot.lane.b32.xlu0 %v669, 32
    %v672 = vpop.permute.xlu0 %671
    %v674 = vadd.f32 %v664, %v672
    %v675 = vtanh.pop %v674
    %677 = vrot.lane.b32.xlu0 %v675, 64
    %v678 = vpop.permute.xlu0 %677
    %v680 = vmul.f32 %v662, %v678
    %v681 = vpack.c.bf16 %v680, %v680
    %683 = vrot.lane.b32.xlu0 %v681, 32
    %v684 = vpop.permute.xlu0 %683
    %v686 = vsel %vm238, %v684, 0
    %688 = vmatprep.subr.bf16.mxu0 0
    %689 = vmatpush1.bf16.msra.mxu0 0
    %690 = vmatprep.subr.bf16.mxu0 0
    %691 = vmatpush1.bf16.msra.mxu0 0
    %692 = vmatprep.subr.bf16.mxu0 0
    %693 = vmatpush1.bf16.msra.mxu0 0
    %694 = vmatprep.subr.bf16.mxu0 0
    %695 = vmatpush1.bf16.msra.mxu0 0
    %696 = vmatprep.subr.bf16.mxu0 0
    %697 = vmatpush1.bf16.msra.mxu0 0
    %698 = vmatprep.subr.bf16.mxu0 0
    %699 = vmatpush1.bf16.msra.mxu0 0
    %700 = vmatprep.subr.bf16.mxu0 0
    %701 = vmatpush1.bf16.msra.mxu0 %v610
    %702 = vmatprep.subr.bf16.mxu0 0
    %703 = vmatpush1.bf16.msra.mxu0 %v609
    %704 = vmatprep.subr.bf16.mxu0 0
    %705 = vmatpush2.bf16.msra.mxu0 0
    %706 = vmatprep.subr.bf16.mxu0 0
    %707 = vmatpush2.bf16.msra.mxu0 0
    %708 = vmatprep.subr.bf16.mxu0 0
    %709 = vmatpush2.bf16.msra.mxu0 0
    %710 = vmatprep.subr.bf16.mxu0 0
    %711 = vmatpush2.bf16.msra.mxu0 0
    %712 = vmatprep.subr.bf16.mxu0 0
    %713 = vmatpush2.bf16.msra.mxu0 0
    %714 = vmatprep.subr.bf16.mxu0 0
    %715 = vmatpush2.bf16.msra.mxu0 0
    %716 = vmatprep.subr.bf16.mxu0 0
    %717 = vmatpush2.bf16.msra.mxu0 0
    %718 = vmatprep.subr.bf16.mxu0 0
    %719 = vmatpush2.bf16.msra.mxu0 0
    %720 = vmatprep.mubr.bf16.mxu0 0
    %721 = vmatmul.mubr.bf16.gmra.mxu0 %v686
    %v722 = vpop.f32.mrf.mxu0
    %v723 = vadd.f32 0.0, %v722
    %v724 = vpop.f32.mrf.mxu0
    %v725 = vpop.f32.mrf.mxu0
    %v726 = vpop.f32.mrf.mxu0
    %727 = vdwg.mxu0
    %v728 = vadd.f32 %v323, %v723
    %v729 = vxor.u32 %v728, 2147483648
    %v730 = vmul.f32 %v729, 1.442695
    %v731 = vpow.pop %v730
    %v732 = vadd.f32 %v731, 1.0
    %v733 = vrcp.pop %v732
    %v734 = vmul.f32 1.0, %v733
    %v735 = vtanh.pop %v728
    %v736 = vmul.f32 %v734, %v674
    %738 = vrot.lane.b32.xlu0 %v735, 64
    %v739 = vpop.permute.xlu0 %738
    %v741 = vmul.f32 %v734, %v739
    %743 = vrot.lane.b32.xlu0 %v741, 32
    %v744 = vpop.permute.xlu0 %743
    %v746 = vadd.f32 %v736, %v744
    %v747 = vtanh.pop %v746
    %749 = vrot.lane.b32.xlu0 %v747, 64
    %v750 = vpop.permute.xlu0 %749
    %v752 = vmul.f32 %v734, %v750
    %v753 = vpack.c.bf16 %v752, %v752
    %755 = vrot.lane.b32.xlu0 %v753, 32
    %v756 = vpop.permute.xlu0 %755
    %v758 = vsel %vm238, %v756, 0
    %760 = vmatprep.subr.bf16.mxu0 0
    %761 = vmatpush1.bf16.msra.mxu0 0
    %762 = vmatprep.subr.bf16.mxu0 0
    %763 = vmatpush1.bf16.msra.mxu0 0
    %764 = vmatprep.subr.bf16.mxu0 0
    %765 = vmatpush1.bf16.msra.mxu0 0
    %766 = vmatprep.subr.bf16.mxu0 0
    %767 = vmatpush1.bf16.msra.mxu0 0
    %768 = vmatprep.subr.bf16.mxu0 0
    %769 = vmatpush1.bf16.msra.mxu0 0
    %770 = vmatprep.subr.bf16.mxu0 0
    %771 = vmatpush1.bf16.msra.mxu0 0
    %772 = vmatprep.subr.bf16.mxu0 0
    %773 = vmatpush1.bf16.msra.mxu0 %v610
    %774 = vmatprep.subr.bf16.mxu0 0
    %775 = vmatpush1.bf16.msra.mxu0 %v609
    %776 = vmatprep.subr.bf16.mxu0 0
    %777 = vmatpush2.bf16.msra.mxu0 0
    %778 = vmatprep.subr.bf16.mxu0 0
    %779 = vmatpush2.bf16.msra.mxu0 0
    %780 = vmatprep.subr.bf16.mxu0 0
    %781 = vmatpush2.bf16.msra.mxu0 0
    %782 = vmatprep.subr.bf16.mxu0 0
    %783 = vmatpush2.bf16.msra.mxu0 0
    %784 = vmatprep.subr.bf16.mxu0 0
    %785 = vmatpush2.bf16.msra.mxu0 0
    %786 = vmatprep.subr.bf16.mxu0 0
    %787 = vmatpush2.bf16.msra.mxu0 0
    %788 = vmatprep.subr.bf16.mxu0 0
    %789 = vmatpush2.bf16.msra.mxu0 0
    %790 = vmatprep.subr.bf16.mxu0 0
    %791 = vmatpush2.bf16.msra.mxu0 0
    %792 = vmatprep.mubr.bf16.mxu0 0
    %793 = vmatmul.mubr.bf16.gmra.mxu0 %v758
    %v794 = vpop.f32.mrf.mxu0
    %v795 = vadd.f32 0.0, %v794
    %v796 = vpop.f32.mrf.mxu0
    %v797 = vpop.f32.mrf.mxu0
    %v798 = vpop.f32.mrf.mxu0
    %799 = vdwg.mxu0
    %v800 = vadd.f32 %v368, %v795
    %v801 = vxor.u32 %v800, 2147483648
    %v802 = vmul.f32 %v801, 1.442695
    %v803 = vpow.pop %v802
    %v804 = vadd.f32 %v803, 1.0
    %v805 = vrcp.pop %v804
    %v806 = vmul.f32 1.0, %v805
    %v807 = vtanh.pop %v800
    %v808 = vmul.f32 %v806, %v746
    %810 = vrot.lane.b32.xlu0 %v807, 64
    %v811 = vpop.permute.xlu0 %810
    %v813 = vmul.f32 %v806, %v811
    %815 = vrot.lane.b32.xlu0 %v813, 32
    %v816 = vpop.permute.xlu0 %815
    %v818 = vadd.f32 %v808, %v816
    %v819 = vtanh.pop %v818
    %821 = vrot.lane.b32.xlu0 %v819, 64
    %v822 = vpop.permute.xlu0 %821
    %v824 = vmul.f32 %v806, %v822
    %v825 = vpack.c.bf16 %v824, %v824
    %827 = vrot.lane.b32.xlu0 %v825, 32
    %v828 = vpop.permute.xlu0 %827
    %v830 = vsel %vm238, %v828, 0
    %832 = vmatprep.subr.bf16.mxu0 0
    %833 = vmatpush1.bf16.msra.mxu0 0
    %834 = vmatprep.subr.bf16.mxu0 0
    %835 = vmatpush1.bf16.msra.mxu0 0
    %836 = vmatprep.subr.bf16.mxu0 0
    %837 = vmatpush1.bf16.msra.mxu0 0
    %838 = vmatprep.subr.bf16.mxu0 0
    %839 = vmatpush1.bf16.msra.mxu0 0
    %840 = vmatprep.subr.bf16.mxu0 0
    %841 = vmatpush1.bf16.msra.mxu0 0
    %842 = vmatprep.subr.bf16.mxu0 0
    %843 = vmatpush1.bf16.msra.mxu0 0
    %844 = vmatprep.subr.bf16.mxu0 0
    %845 = vmatpush1.bf16.msra.mxu0 %v610
    %846 = vmatprep.subr.bf16.mxu0 0
    %847 = vmatpush1.bf16.msra.mxu0 %v609
    %848 = vmatprep.subr.bf16.mxu0 0
    %849 = vmatpush2.bf16.msra.mxu0 0
    %850 = vmatprep.subr.bf16.mxu0 0
    %851 = vmatpush2.bf16.msra.mxu0 0
    %852 = vmatprep.subr.bf16.mxu0 0
    %853 = vmatpush2.bf16.msra.mxu0 0
    %854 = vmatprep.subr.bf16.mxu0 0
    %855 = vmatpush2.bf16.msra.mxu0 0
    %856 = vmatprep.subr.bf16.mxu0 0
    %857 = vmatpush2.bf16.msra.mxu0 0
    %858 = vmatprep.subr.bf16.mxu0 0
    %859 = vmatpush2.bf16.msra.mxu0 0
    %860 = vmatprep.subr.bf16.mxu0 0
    %861 = vmatpush2.bf16.msra.mxu0 0
    %862 = vmatprep.subr.bf16.mxu0 0
    %863 = vmatpush2.bf16.msra.mxu0 0
    %864 = vmatprep.mubr.bf16.mxu0 0
    %865 = vmatmul.mubr.bf16.gmra.mxu0 %v830
    %v866 = vpop.f32.mrf.mxu0
    %v867 = vadd.f32 0.0, %v866
    %v868 = vpop.f32.mrf.mxu0
    %v869 = vpop.f32.mrf.mxu0
    %v870 = vpop.f32.mrf.mxu0
    %871 = vdwg.mxu0
    %v872 = vadd.f32 %v413, %v867
    %v873 = vxor.u32 %v872, 2147483648
    %v874 = vmul.f32 %v873, 1.442695
    %v875 = vpow.pop %v874
    %v876 = vadd.f32 %v875, 1.0
    %v877 = vrcp.pop %v876
    %v878 = vmul.f32 1.0, %v877
    %v879 = vtanh.pop %v872
    %v880 = vmul.f32 %v878, %v818
    %882 = vrot.lane.b32.xlu0 %v879, 64
    %v883 = vpop.permute.xlu0 %882
    %v885 = vmul.f32 %v878, %v883
    %887 = vrot.lane.b32.xlu0 %v885, 32
    %v888 = vpop.permute.xlu0 %887
    %v890 = vadd.f32 %v880, %v888
    %v891 = vtanh.pop %v890
    %893 = vrot.lane.b32.xlu0 %v891, 64
    %v894 = vpop.permute.xlu0 %893
    %v896 = vmul.f32 %v878, %v894
    %v897 = vpack.c.bf16 %v896, %v896
    %899 = vrot.lane.b32.xlu0 %v897, 32
    %v900 = vpop.permute.xlu0 %899
    %v902 = vsel %vm238, %v900, 0
    %904 = vmatprep.subr.bf16.mxu0 0
    %905 = vmatpush1.bf16.msra.mxu0 0
    %906 = vmatprep.subr.bf16.mxu0 0
    %907 = vmatpush1.bf16.msra.mxu0 0
    %908 = vmatprep.subr.bf16.mxu0 0
    %909 = vmatpush1.bf16.msra.mxu0 0
    %910 = vmatprep.subr.bf16.mxu0 0
    %911 = vmatpush1.bf16.msra.mxu0 0
    %912 = vmatprep.subr.bf16.mxu0 0
    %913 = vmatpush1.bf16.msra.mxu0 0
    %914 = vmatprep.subr.bf16.mxu0 0
    %915 = vmatpush1.bf16.msra.mxu0 0
    %916 = vmatprep.subr.bf16.mxu0 0
    %917 = vmatpush1.bf16.msra.mxu0 %v610
    %918 = vmatprep.subr.bf16.mxu0 0
    %919 = vmatpush1.bf16.msra.mxu0 %v609
    %920 = vmatprep.subr.bf16.mxu0 0
    %921 = vmatpush2.bf16.msra.mxu0 0
    %922 = vmatprep.subr.bf16.mxu0 0
    %923 = vmatpush2.bf16.msra.mxu0 0
    %924 = vmatprep.subr.bf16.mxu0 0
    %925 = vmatpush2.bf16.msra.mxu0 0
    %926 = vmatprep.subr.bf16.mxu0 0
    %927 = vmatpush2.bf16.msra.mxu0 0
    %928 = vmatprep.subr.bf16.mxu0 0
    %929 = vmatpush2.bf16.msra.mxu0 0
    %930 = vmatprep.subr.bf16.mxu0 0
    %931 = vmatpush2.bf16.msra.mxu0 0
    %932 = vmatprep.subr.bf16.mxu0 0
    %933 = vmatpush2.bf16.msra.mxu0 0
    %934 = vmatprep.subr.bf16.mxu0 0
    %935 = vmatpush2.bf16.msra.mxu0 0
    %936 = vmatprep.mubr.bf16.mxu0 0
    %937 = vmatmul.mubr.bf16.gmra.mxu0 %v902
    %v938 = vpop.f32.mrf.mxu0
    %v939 = vadd.f32 0.0, %v938
    %v940 = vpop.f32.mrf.mxu0
    %v941 = vpop.f32.mrf.mxu0
    %v942 = vpop.f32.mrf.mxu0
    %943 = vdwg.mxu0
    %v944 = vadd.f32 %v456, %v939
    %v945 = vxor.u32 %v944, 2147483648
    %v946 = vmul.f32 %v945, 1.442695
    %v947 = vpow.pop %v946
    %v948 = vadd.f32 %v947, 1.0
    %v949 = vrcp.pop %v948
    %v950 = vmul.f32 1.0, %v949
    %v951 = vtanh.pop %v944
    %v952 = vmul.f32 %v950, %v890
    %954 = vrot.lane.b32.xlu0 %v951, 64
    %v955 = vpop.permute.xlu0 %954
    %v957 = vmul.f32 %v950, %v955
    %959 = vrot.lane.b32.xlu0 %v957, 32
    %v960 = vpop.permute.xlu0 %959
    %v962 = vadd.f32 %v952, %v960
    %v963 = vtanh.pop %v962
    %965 = vrot.lane.b32.xlu0 %v963, 64
    %v966 = vpop.permute.xlu0 %965
    %v968 = vmul.f32 %v950, %v966
    %v969 = vpack.c.bf16 %v968, %v968
    %971 = vrot.lane.b32.xlu0 %v969, 32
    %v972 = vpop.permute.xlu0 %971
    %v974 = vsel %vm238, %v972, 0
    %976 = vmatprep.subr.bf16.mxu0 0
    %977 = vmatpush1.bf16.msra.mxu0 0
    %978 = vmatprep.subr.bf16.mxu0 0
    %979 = vmatpush1.bf16.msra.mxu0 0
    %980 = vmatprep.subr.bf16.mxu0 0
    %981 = vmatpush1.bf16.msra.mxu0 0
    %982 = vmatprep.subr.bf16.mxu0 0
    %983 = vmatpush1.bf16.msra.mxu0 0
    %984 = vmatprep.subr.bf16.mxu0 0
    %985 = vmatpush1.bf16.msra.mxu0 0
    %986 = vmatprep.subr.bf16.mxu0 0
    %987 = vmatpush1.bf16.msra.mxu0 0
    %988 = vmatprep.subr.bf16.mxu0 0
    %989 = vmatpush1.bf16.msra.mxu0 %v610
    %990 = vmatprep.subr.bf16.mxu0 0
    %991 = vmatpush1.bf16.msra.mxu0 %v609
    %992 = vmatprep.subr.bf16.mxu0 0
    %993 = vmatpush2.bf16.msra.mxu0 0
    %994 = vmatprep.subr.bf16.mxu0 0
    %995 = vmatpush2.bf16.msra.mxu0 0
    %996 = vmatprep.subr.bf16.mxu0 0
    %997 = vmatpush2.bf16.msra.mxu0 0
    %998 = vmatprep.subr.bf16.mxu0 0
    %999 = vmatpush2.bf16.msra.mxu0 0
    %1000 = vmatprep.subr.bf16.mxu0 0
    %1001 = vmatpush2.bf16.msra.mxu0 0
    %1002 = vmatprep.subr.bf16.mxu0 0
    %1003 = vmatpush2.bf16.msra.mxu0 0
    %1004 = vmatprep.subr.bf16.mxu0 0
    %1005 = vmatpush2.bf16.msra.mxu0 0
    %1006 = vmatprep.subr.bf16.mxu0 0
    %1007 = vmatpush2.bf16.msra.mxu0 0
    %1008 = vmatprep.mubr.bf16.mxu0 0
    %1009 = vmatmul.mubr.bf16.gmra.mxu0 %v974
    %v1010 = vpop.f32.mrf.mxu0
    %v1011 = vadd.f32 0.0, %v1010
    %v1012 = vpop.f32.mrf.mxu0
    %v1013 = vpop.f32.mrf.mxu0
    %v1014 = vpop.f32.mrf.mxu0
    %1015 = vdwg.mxu0
    %v1016 = vadd.f32 %v502, %v1011
    %v1017 = vxor.u32 %v1016, 2147483648
    %v1018 = vmul.f32 %v1017, 1.442695
    %v1019 = vpow.pop %v1018
    %v1020 = vadd.f32 %v1019, 1.0
    %v1021 = vrcp.pop %v1020
    %v1022 = vmul.f32 1.0, %v1021
    %v1023 = vtanh.pop %v1016
    %v1024 = vmul.f32 %v1022, %v962
    %1026 = vrot.lane.b32.xlu0 %v1023, 64
    %v1027 = vpop.permute.xlu0 %1026
    %v1029 = vmul.f32 %v1022, %v1027
    %1031 = vrot.lane.b32.xlu0 %v1029, 32
    %v1032 = vpop.permute.xlu0 %1031
    %v1034 = vadd.f32 %v1024, %v1032
    %v1035 = vtanh.pop %v1034
    %1037 = vrot.lane.b32.xlu0 %v1035, 64
    %v1038 = vpop.permute.xlu0 %1037
    %v1040 = vmul.f32 %v1022, %v1038
    %v1041 = vpack.c.bf16 %v1040, %v1040
    %1043 = vrot.lane.b32.xlu0 %v1041, 32
    %v1044 = vpop.permute.xlu0 %1043
    %v1046 = vsel %vm238, %v1044, 0
    %1048 = vmatprep.subr.bf16.mxu0 0
    %1049 = vmatpush1.bf16.msra.mxu0 0
    %1050 = vmatprep.subr.bf16.mxu0 0
    %1051 = vmatpush1.bf16.msra.mxu0 0
    %1052 = vmatprep.subr.bf16.mxu0 0
    %1053 = vmatpush1.bf16.msra.mxu0 0
    %1054 = vmatprep.subr.bf16.mxu0 0
    %1055 = vmatpush1.bf16.msra.mxu0 0
    %1056 = vmatprep.subr.bf16.mxu0 0
    %1057 = vmatpush1.bf16.msra.mxu0 0
    %1058 = vmatprep.subr.bf16.mxu0 0
    %1059 = vmatpush1.bf16.msra.mxu0 0
    %1060 = vmatprep.subr.bf16.mxu0 0
    %1061 = vmatpush1.bf16.msra.mxu0 %v610
    %1062 = vmatprep.subr.bf16.mxu0 0
    %1063 = vmatpush1.bf16.msra.mxu0 %v609
    %1064 = vmatprep.subr.bf16.mxu0 0
    %1065 = vmatpush2.bf16.msra.mxu0 0
    %1066 = vmatprep.subr.bf16.mxu0 0
    %1067 = vmatpush2.bf16.msra.mxu0 0
    %1068 = vmatprep.subr.bf16.mxu0 0
    %1069 = vmatpush2.bf16.msra.mxu0 0
    %1070 = vmatprep.subr.bf16.mxu0 0
    %1071 = vmatpush2.bf16.msra.mxu0 0
    %1072 = vmatprep.subr.bf16.mxu0 0
    %1073 = vmatpush2.bf16.msra.mxu0 0
    %1074 = vmatprep.subr.bf16.mxu0 0
    %1075 = vmatpush2.bf16.msra.mxu0 0
    %1076 = vmatprep.subr.bf16.mxu0 0
    %1077 = vmatpush2.bf16.msra.mxu0 0
    %1078 = vmatprep.subr.bf16.mxu0 0
    %1079 = vmatpush2.bf16.msra.mxu0 0
    %1080 = vmatprep.mubr.bf16.mxu0 0
    %1081 = vmatmul.mubr.bf16.gmra.mxu0 %v1046
    %v1082 = vpop.f32.mrf.mxu0
    %v1083 = vadd.f32 0.0, %v1082
    %v1084 = vpop.f32.mrf.mxu0
    %v1085 = vpop.f32.mrf.mxu0
    %v1086 = vpop.f32.mrf.mxu0
    %1087 = vdwg.mxu0
    %v1088 = vadd.f32 %v547, %v1083
    %v1089 = vxor.u32 %v1088, 2147483648
    %v1090 = vmul.f32 %v1089, 1.442695
    %v1091 = vpow.pop %v1090
    %v1092 = vadd.f32 %v1091, 1.0
    %v1093 = vrcp.pop %v1092
    %v1094 = vmul.f32 1.0, %v1093
    %v1095 = vtanh.pop %v1088
    %v1096 = vmul.f32 %v1094, %v1034
    %1098 = vrot.lane.b32.xlu0 %v1095, 64
    %v1099 = vpop.permute.xlu0 %1098
    %v1101 = vmul.f32 %v1094, %v1099
    %1103 = vrot.lane.b32.xlu0 %v1101, 32
    %v1104 = vpop.permute.xlu0 %1103
    %v1106 = vadd.f32 %v1096, %v1104
    %v1107 = vtanh.pop %v1106
    %1109 = vrot.lane.b32.xlu0 %v1107, 64
    %v1110 = vpop.permute.xlu0 %1109
    %v1112 = vmul.f32 %v1094, %v1110
    %v1113 = vpack.c.bf16 %v1112, %v1112
    %1115 = vrot.lane.b32.xlu0 %v1113, 32
    %v1116 = vpop.permute.xlu0 %1115
    %v1118 = vsel %vm238, %v1116, 0
    %1120 = vmatprep.subr.bf16.mxu0 0
    %1121 = vmatpush1.bf16.msra.mxu0 0
    %1122 = vmatprep.subr.bf16.mxu0 0
    %1123 = vmatpush1.bf16.msra.mxu0 0
    %1124 = vmatprep.subr.bf16.mxu0 0
    %1125 = vmatpush1.bf16.msra.mxu0 0
    %1126 = vmatprep.subr.bf16.mxu0 0
    %1127 = vmatpush1.bf16.msra.mxu0 0
    %1128 = vmatprep.subr.bf16.mxu0 0
    %1129 = vmatpush1.bf16.msra.mxu0 0
    %1130 = vmatprep.subr.bf16.mxu0 0
    %1131 = vmatpush1.bf16.msra.mxu0 0
    %1132 = vmatprep.subr.bf16.mxu0 0
    %1133 = vmatpush1.bf16.msra.mxu0 %v610
    %1134 = vmatprep.subr.bf16.mxu0 0
    %1135 = vmatpush1.bf16.msra.mxu0 %v609
    %1136 = vmatprep.subr.bf16.mxu0 0
    %1137 = vmatpush2.bf16.msra.mxu0 0
    %1138 = vmatprep.subr.bf16.mxu0 0
    %1139 = vmatpush2.bf16.msra.mxu0 0
    %1140 = vmatprep.subr.bf16.mxu0 0
    %1141 = vmatpush2.bf16.msra.mxu0 0
    %1142 = vmatprep.subr.bf16.mxu0 0
    %1143 = vmatpush2.bf16.msra.mxu0 0
    %1144 = vmatprep.subr.bf16.mxu0 0
    %1145 = vmatpush2.bf16.msra.mxu0 0
    %1146 = vmatprep.subr.bf16.mxu0 0
    %1147 = vmatpush2.bf16.msra.mxu0 0
    %1148 = vmatprep.subr.bf16.mxu0 0
    %1149 = vmatpush2.bf16.msra.mxu0 0
    %1150 = vmatprep.subr.bf16.mxu0 0
    %1151 = vmatpush2.bf16.msra.mxu0 0
    %1152 = vmatprep.mubr.bf16.mxu0 0
    %1153 = vmatmul.mubr.bf16.gmra.mxu0 %v1118
    %v1154 = vpop.f32.mrf.mxu0
    %v1155 = vadd.f32 0.0, %v1154
    %v1156 = vpop.f32.mrf.mxu0
    %v1157 = vpop.f32.mrf.mxu0
    %v1158 = vpop.f32.mrf.mxu0
    %1159 = vdwg.mxu0
    %v1160 = vadd.f32 %v592, %v1155
    %v1161 = vxor.u32 %v1160, 2147483648
    %v1162 = vmul.f32 %v1161, 1.442695
    %v1163 = vpow.pop %v1162
    %v1164 = vadd.f32 %v1163, 1.0
    %v1165 = vrcp.pop %v1164
    %v1166 = vmul.f32 1.0, %v1165
    %v1167 = vtanh.pop %v1160
    %v1168 = vmul.f32 %v1166, %v1106
    %1170 = vrot.lane.b32.xlu0 %v1167, 64
    %v1171 = vpop.permute.xlu0 %1170
    %v1173 = vmul.f32 %v1166, %v1171
    %1175 = vrot.lane.b32.xlu0 %v1173, 32
    %v1176 = vpop.permute.xlu0 %1175
    %v1178 = vadd.f32 %v1168, %v1176
    %v1179 = vtanh.pop %v1178
    %1181 = vrot.lane.b32.xlu0 %v1179, 64
    %v1182 = vpop.permute.xlu0 %1181
    %v1184 = vmul.f32 %v1166, %v1182
    %v1185 = vld [vmem:[%s6] sm:$0xff]
    %v1186 = vld [vmem:[%s6 + $0x8] sm:$0xff]
    %v1187 = vld [vmem:[%s6 + $0x10] sm:$0xff]
    %v1188 = vld [vmem:[%s6 + $0x18] sm:$0xff]
    %v1189 = vld [vmem:[#allocation2] sm:$0x1]
    %v1191 = vlaneseq
    %v1192 = vshrl.u32 %v1191, 7
    %v1193 = vsub.s32 0, %v1192
    %v1194 = vrot.slane %v1189, %v1193
    %1197 = vrot.lane.b32.xlu0 %v1184, 32
    %v1198 = vpop.permute.xlu0 %1197
    %v1199 = vsel %vm238, %v1198, 0
    %1201 = vmatprep.subr.mxu0 0.0
    %1202 = vmatpush1.msra.mxu0 0.0
    %1203 = vmatprep.subr.mxu0 0.0
    %1204 = vmatpush1.msra.mxu0 0.0
    %1205 = vmatprep.subr.mxu0 0.0
    %1206 = vmatpush1.msra.mxu0 0.0
    %1207 = vmatprep.subr.mxu0 0.0
    %1208 = vmatpush1.msra.mxu0 0.0
    %1209 = vmatprep.subr.mxu0 0.0
    %1210 = vmatpush1.msra.mxu0 0.0
    %1211 = vmatprep.subr.mxu0 0.0
    %1212 = vmatpush1.msra.mxu0 0.0
    %1213 = vmatprep.subr.mxu0 0.0
    %1214 = vmatpush1.msra.mxu0 0.0
    %1215 = vmatprep.subr.mxu0 0.0
    %1216 = vmatpush1.msra.mxu0 0.0
    %1217 = vmatprep.subr.mxu0 0.0
    %1218 = vmatpush1.msra.mxu0 0.0
    %1219 = vmatprep.subr.mxu0 0.0
    %1220 = vmatpush1.msra.mxu0 0.0
    %1221 = vmatprep.subr.mxu0 0.0
    %1222 = vmatpush1.msra.mxu0 0.0
    %1223 = vmatprep.subr.mxu0 0.0
    %1224 = vmatpush1.msra.mxu0 0.0
    %1225 = vmatprep.subr.mxu0 0.0
    %1226 = vmatpush1.msra.mxu0 %v1188
    %1227 = vmatprep.subr.mxu0 0.0
    %1228 = vmatpush1.msra.mxu0 %v1187
    %1229 = vmatprep.subr.mxu0 0.0
    %1230 = vmatpush1.msra.mxu0 %v1186
    %1231 = vmatprep.subr.mxu0 0.0
    %1232 = vmatpush1.msra.mxu0 %v1185
    %1233 = vmatprep.subr.mxu0 0.0
    %1234 = vmatpush2.msra.mxu0 0.0
    %1235 = vmatprep.subr.mxu0 0.0
    %1236 = vmatpush2.msra.mxu0 0.0
    %1237 = vmatprep.subr.mxu0 0.0
    %1238 = vmatpush2.msra.mxu0 0.0
    %1239 = vmatprep.subr.mxu0 0.0
    %1240 = vmatpush2.msra.mxu0 0.0
    %1241 = vmatprep.subr.mxu0 0.0
    %1242 = vmatpush2.msra.mxu0 0.0
    %1243 = vmatprep.subr.mxu0 0.0
    %1244 = vmatpush2.msra.mxu0 0.0
    %1245 = vmatprep.subr.mxu0 0.0
    %1246 = vmatpush2.msra.mxu0 0.0
    %1247 = vmatprep.subr.mxu0 0.0
    %1248 = vmatpush2.msra.mxu0 0.0
    %1249 = vmatprep.subr.mxu0 0.0
    %1250 = vmatpush2.msra.mxu0 0.0
    %1251 = vmatprep.subr.mxu0 0.0
    %1252 = vmatpush2.msra.mxu0 0.0
    %1253 = vmatprep.subr.mxu0 0.0
    %1254 = vmatpush2.msra.mxu0 0.0
    %1255 = vmatprep.subr.mxu0 0.0
    %1256 = vmatpush2.msra.mxu0 0.0
    %1257 = vmatprep.subr.mxu0 0.0
    %1258 = vmatpush2.msra.mxu0 0.0
    %1259 = vmatprep.subr.mxu0 0.0
    %1260 = vmatpush2.msra.mxu0 0.0
    %1261 = vmatprep.subr.mxu0 0.0
    %1262 = vmatpush2.msra.mxu0 0.0
    %1263 = vmatprep.subr.mxu0 0.0
    %1264 = vmatpush2.msra.mxu0 0.0
    %1265 = vmatprep.mubr.f32.mxu0 0.0
    %1266 = vmatmul.mubr.f32.gmra.mxu0 %v1199
    %v1267 = vpop.f32.mrf.mxu0
    %v1268 = vadd.f32 %v1194, %v1267
    %v1269 = vpop.f32.mrf.mxu0
    %1270 = vdwg.mxu0
    %vm1271 = vcmask 7168
    %1272 = vst.msk [vmem:[%s8] sm:$0xff] %vm1271, %v1268
    // Predicated region
    $region42: #{resnls_forward.1} parent=1 // pred_check
      _
    $region43: #{resnls_forward.1} parent=1 // pred_check_branch
      %1274 = sbr.rel (0) target = $region45
    $region44: #{resnls_forward.1} parent=1 // pred_region
      _
    $region45: #{resnls_forward.1} parent=1 // pred_fallthru
      _
    // Predicated region
    $region46: #{resnls_forward.1} parent=1 // pred_check
      _
    $region47: #{resnls_forward.1} parent=1 // pred_check_branch
      %1276 = sbr.rel (0) target = $region49
    $region48: #{resnls_forward.1} parent=1 // pred_region
      _
    $region49: #{resnls_forward.1} parent=1 // pred_fallthru
      _
    %1277 = vsyncpa [#allocation4], 1
    %1278 = vsyncpa [#allocation6], 1

</llo_original>
